<compile_context>
chip_gen: v7x
topology: tpu7x:2x2x1
jax: 0.10.0
libtpu: 0.0.40
codegen_flags: <defaults>
</compile_context>

<pallas_src>
import functools

import jax
import jax.numpy as jnp
from jax.experimental import pallas as pl
from jax.experimental.pallas import tpu as pltpu


def _round_up(n, m):
    return ((n + m - 1) // m) * m


def _pad_axis(a, axis, amount):
    if amount == 0:
        return a
    pads = [(0, 0)] * a.ndim
    pads[axis] = (0, amount)
    return jnp.pad(a, pads)


# ----------------------------- Pallas kernel -----------------------------

def _lstm_fc_kernel(x_ref, wih_ref, whh_ref, b_ref, wfc_ref, bfc_ref,
                    out_ref, xw_ref, *, T, Bp, Hp):
    # prologue: input projection for ALL timesteps in one MXU GEMM (+ fused bias)
    xw_ref[...] = (jnp.dot(x_ref[...], wih_ref[...],
                           preferred_element_type=jnp.float32)
                   + b_ref[...])

    h = jnp.zeros((Bp, Hp), jnp.float32)
    c = jnp.zeros((Bp, Hp), jnp.float32)

    H3 = 3 * Hp

    # recurrence: T is small & static -> fully unrolled straight-line code.
    # (for large T this would become a lax.fori_loop)
    for t in range(T):
        row = t * Bp
        # sigmoid-gate slab (i, f, o): one MXU dot, then ONE wide EUP tanh
        # (sigmoid(z) == 0.5*tanh(0.5*z) + 0.5).  W_hh slices are read from the
        # VMEM ref per use, so no 64-vreg live range across the unrolled loop.
        sig_z = (xw_ref[row:row + Bp, 0:H3]
                 + jnp.dot(h, whh_ref[:, 0:H3],
                           preferred_element_type=jnp.float32))
        sig = 0.5 * jnp.tanh(0.5 * sig_z) + 0.5
        # tanh-gate slab (g): its MXU dot overlaps the sigmoid slab's EUP work
        g = jnp.tanh(xw_ref[row:row + Bp, H3:4 * Hp]
                     + jnp.dot(h, whh_ref[:, H3:4 * Hp],
                               preferred_element_type=jnp.float32))
        i_g = sig[:, 0:Hp]
        f_g = sig[:, Hp:2 * Hp]
        o_g = sig[:, 2 * Hp:H3]
        c = f_g * c + i_g * g
        h = o_g * jnp.tanh(c)

    # epilogue: fc(hn[-1]); output padded to 128 lanes -> unmasked lane-dense store
    out_ref[...] = (jnp.dot(h, wfc_ref[...],
                            preferred_element_type=jnp.float32)
                    + bfc_ref[...])


# ----------------------------- one-time weight prep -----------------------

_GATE_PERM = (0, 1, 3, 2)   # PyTorch (i, f, g, o) -> kernel (i, f, o, g)


def prepare_lstm_params(w_ih, w_hh, b_ih, b_hh, w_fc, b_fc):
    """One-time pad / gate-permute / transpose of PyTorch nn.LSTM / nn.Linear weights.

    w_ih: (4H, I), w_hh: (4H, H), b_ih/b_hh: (4H,), w_fc: (O, H), b_fc: (O,).
    """
    H = w_hh.shape[1]
    I = w_ih.shape[1]
    O = w_fc.shape[0]
    Hp = _round_up(H, 128)     # hidden padded to lane width
    Op = _round_up(O, 128)     # fc output padded to lane width
    perm = jnp.asarray(_GATE_PERM)

    wih = jnp.take(w_ih.astype(jnp.float32).reshape(4, H, I), perm, axis=0)
    wih = _pad_axis(wih, 1, Hp - H).reshape(4 * Hp, I).T                  # (I, 4Hp)

    whh = jnp.take(w_hh.astype(jnp.float32).reshape(4, H, H), perm, axis=0)
    whh = _pad_axis(_pad_axis(whh, 1, Hp - H), 2, Hp - H)
    whh = whh.reshape(4 * Hp, Hp).T                                       # (Hp, 4Hp)

    b = jnp.take((b_ih + b_hh).astype(jnp.float32).reshape(4, H), perm, axis=0)
    b = _pad_axis(b, 1, Hp - H).reshape(1, 4 * Hp)                        # (1, 4Hp)

    wfc = _pad_axis(_pad_axis(w_fc.astype(jnp.float32), 1, Hp - H), 0, Op - O).T  # (Hp, Op)
    bfc = _pad_axis(b_fc.astype(jnp.float32), 0, Op - O).reshape(1, Op)           # (1, Op)

    return dict(wih=wih, whh=whh, b=b, wfc=wfc, bfc=bfc, out_features=O)


# ----------------------------- per-call forward ----------------------------

@functools.partial(jax.jit, static_argnames=("out_features",))
def _lstm_forward(x, wih, whh, b, wfc, bfc, *, out_features):
    B, T, I = x.shape
    Hp = whh.shape[0]
    Op = wfc.shape[1]
    Bp = _round_up(B, 8)       # batch padded to the f32 sublane width

    # Time-major, batch padded, flattened to 2-D so the kernel prologue can run a
    # single (T*Bp, I) x (I, 4Hp) GEMM for the whole input projection.
    x2d = _pad_axis(jnp.swapaxes(x, 0, 1), 1, Bp - B).reshape(T * Bp, I)

    kernel = functools.partial(_lstm_fc_kernel, T=T, Bp=Bp, Hp=Hp)

    out = pl.pallas_call(
        kernel,
        out_shape=jax.ShapeDtypeStruct((Bp, Op), jnp.float32),
        grid_spec=pltpu.PrefetchScalarGridSpec(
            num_scalar_prefetch=0,
            grid=(1,),                                            # single invocation
            in_specs=[
                pl.BlockSpec((T * Bp, I), lambda i: (0, 0)),      # x, all timesteps
                pl.BlockSpec((I, 4 * Hp), lambda i: (0, 0)),      # W_ih^T (padded, [i,f,o,g])
                pl.BlockSpec((Hp, 4 * Hp), lambda i: (0, 0)),     # W_hh^T (padded, [i,f,o,g])
                pl.BlockSpec((1, 4 * Hp), lambda i: (0, 0)),      # b_ih + b_hh
                pl.BlockSpec((Hp, Op), lambda i: (0, 0)),         # W_fc^T (padded)
                pl.BlockSpec((1, Op), lambda i: (0, 0)),          # b_fc (padded)
            ],
            out_specs=pl.BlockSpec((Bp, Op), lambda i: (0, 0)),
            scratch_shapes=[
                pltpu.VMEM((T * Bp, 4 * Hp), jnp.float32),        # hoisted x-projection
            ],
        ),
        compiler_params=pltpu.CompilerParams(
            dimension_semantics=("arbitrary",)),
    )(x2d, wih, whh, b, wfc, bfc)

    return out[:B, :out_features]


def lstm_model_forward(x, params):
    """x: (B, T, I) f32; params from prepare_lstm_params()."""
    return _lstm_forward(x, params["wih"], params["whh"], params["b"],
                         params["wfc"], params["bfc"],
                         out_features=params["out_features"])


# ----------------------------- pure-JAX reference -------------------------

def lstm_model_ref(x, w_ih, w_hh, b_ih, b_hh, w_fc, b_fc):
    B, T, I = x.shape
    H = w_hh.shape[1]

    def step(carry, x_t):
        h, c = carry
        gates = x_t @ w_ih.T + h @ w_hh.T + b_ih + b_hh
        i, f, g, o = jnp.split(gates, 4, axis=-1)
        i = jax.nn.sigmoid(i)
        f = jax.nn.sigmoid(f)
        g = jnp.tanh(g)
        o = jax.nn.sigmoid(o)
        c = f * c + i * g
        h = o * jnp.tanh(c)
        return (h, c), None

    (h, _), _ = jax.lax.scan(step,
                             (jnp.zeros((B, H), jnp.float32),
                              jnp.zeros((B, H), jnp.float32)),
                             jnp.swapaxes(x, 0, 1))
    return h @ w_fc.T + b_fc


# ----------------------------- main ---------------------------------------

if __name__ == "__main__":
    hidden_size = 120
    input_size = 2
    output_size = 1
    B, T = 2, 8

    key = jax.random.PRNGKey(0)
    ks = jax.random.split(key, 7)
    k = 1.0 / jnp.sqrt(hidden_size)

    x = jax.random.normal(ks[0], (B, T, input_size), dtype=jnp.float32)
    w_ih = jax.random.uniform(ks[1], (4 * hidden_size, input_size), jnp.float32, -k, k)
    w_hh = jax.random.uniform(ks[2], (4 * hidden_size, hidden_size), jnp.float32, -k, k)
    b_ih = jax.random.uniform(ks[3], (4 * hidden_size,), jnp.float32, -k, k)
    b_hh = jax.random.uniform(ks[4], (4 * hidden_size,), jnp.float32, -k, k)
    w_fc = jax.random.uniform(ks[5], (output_size, hidden_size), jnp.float32, -k, k)
    b_fc = jax.random.uniform(ks[6], (output_size,), jnp.float32, -k, k)

    # One-time weight prep (hoisted out of the per-call path).
    params = jax.tree_util.tree_map(
        lambda a: jax.block_until_ready(a) if isinstance(a, jax.Array) else a,
        prepare_lstm_params(w_ih, w_hh, b_ih, b_hh, w_fc, b_fc))

    out = lstm_model_forward(x, params)
    out = jax.block_until_ready(out)

    ref = lstm_model_ref(x, w_ih, w_hh, b_ih, b_hh, w_fc, b_fc)
    assert out.shape == (B, output_size)
    if not jnp.allclose(out, ref, atol=1e-4, rtol=1e-4):
        raise AssertionError(f"mismatch: pallas={out} ref={ref}")

    print("KERNEL_OK")
</pallas_src>

<mosaic_0001>
module attributes {stable_mosaic.version = 11 : i64} {
  func.func @_lstm_fc_kernel(%arg0: i32, %arg1: memref<64x2xf32, #tpu.memory_space<vmem>>, %arg2: memref<2x512xf32, #tpu.memory_space<vmem>>, %arg3: memref<128x512xf32, #tpu.memory_space<vmem>>, %arg4: memref<1x512xf32, #tpu.memory_space<vmem>>, %arg5: memref<128x128xf32, #tpu.memory_space<vmem>>, %arg6: memref<1x128xf32, #tpu.memory_space<vmem>>, %arg7: memref<8x128xf32, #tpu.memory_space<vmem>>, %arg8: memref<64x512xf32, #tpu.memory_space<vmem>>) attributes {dimension_semantics = [#tpu.dimension_semantics<arbitrary>], iteration_bounds = array<i64: 1>, scalar_prefetch = 0 : i64, scratch_operands = 1 : i64, tpu.core_type = #tpu.core_type<tc>, window_params = [{pipeline_mode = #tpu.pipeline_mode<synchronous>, transform_indices = @transform_0, window_bounds = array<i64: 64, 2>}, {pipeline_mode = #tpu.pipeline_mode<synchronous>, transform_indices = @transform_1, window_bounds = array<i64: 2, 512>}, {pipeline_mode = #tpu.pipeline_mode<synchronous>, transform_indices = @transform_2, window_bounds = array<i64: 128, 512>}, {pipeline_mode = #tpu.pipeline_mode<synchronous>, transform_indices = @transform_3, window_bounds = array<i64: 1, 512>}, {pipeline_mode = #tpu.pipeline_mode<synchronous>, transform_indices = @transform_4, window_bounds = array<i64: 128, 128>}, {pipeline_mode = #tpu.pipeline_mode<synchronous>, transform_indices = @transform_5, window_bounds = array<i64: 1, 128>}, {pipeline_mode = #tpu.pipeline_mode<synchronous>, transform_indices = @transform_6, window_bounds = array<i64: 8, 128>}]} {
    %c0 = arith.constant 0 : index
    %c0_0 = arith.constant 0 : index
    %0 = vector.load %arg1[%c0, %c0_0] : memref<64x2xf32, #tpu.memory_space<vmem>>, vector<64x2xf32>
    %c0_1 = arith.constant 0 : index
    %c0_2 = arith.constant 0 : index
    %1 = vector.load %arg2[%c0_1, %c0_2] : memref<2x512xf32, #tpu.memory_space<vmem>>, vector<2x512xf32>
    %cst = arith.constant dense<0.000000e+00> : vector<64x512xf32>
    %2 = tpu.matmul %0, %1, %cst {dimension_numbers = #tpu.dot_dimension_numbers<[1], [0], [0], [1], [0, 0, 1, 1], [], []>} : vector<64x2xf32>, vector<2x512xf32>, vector<64x512xf32> -> vector<64x512xf32>
    %c0_3 = arith.constant 0 : index
    %c0_4 = arith.constant 0 : index
    %3 = vector.load %arg4[%c0_3, %c0_4] : memref<1x512xf32, #tpu.memory_space<vmem>>, vector<1x512xf32>
    %4 = vector.broadcast %3 : vector<1x512xf32> to vector<64x512xf32>
    %5 = arith.addf %2, %4 : vector<64x512xf32>
    %c0_5 = arith.constant 0 : index
    %c0_6 = arith.constant 0 : index
    %6 = vector.load %arg8[%c0_5, %c0_6] : memref<64x512xf32, #tpu.memory_space<vmem>>, vector<64x512xf32>
    tpu.vector_store %arg8[%c0_5, %c0_6], %5 {strides = array<i32>} : memref<64x512xf32, #tpu.memory_space<vmem>>, vector<64x512xf32>,
    %cst_7 = arith.constant 0.000000e+00 : f32
    %7 = vector.broadcast %cst_7 : f32 to vector<8x128xf32>
    %cst_8 = arith.constant 0.000000e+00 : f32
    %8 = vector.broadcast %cst_8 : f32 to vector<8x128xf32>
    %c0_9 = arith.constant 0 : index
    %c0_10 = arith.constant 0 : index
    %9 = vector.load %arg8[%c0_9, %c0_10] : memref<64x512xf32, #tpu.memory_space<vmem>>, vector<8x384xf32>
    %c0_11 = arith.constant 0 : index
    %c0_12 = arith.constant 0 : index
    %10 = vector.load %arg3[%c0_11, %c0_12] : memref<128x512xf32, #tpu.memory_space<vmem>>, vector<128x384xf32>
    %cst_13 = arith.constant dense<0.000000e+00> : vector<8x384xf32>
    %11 = tpu.matmul %7, %10, %cst_13 {dimension_numbers = #tpu.dot_dimension_numbers<[1], [0], [0], [1], [0, 0, 1, 1], [], []>} : vector<8x128xf32>, vector<128x384xf32>, vector<8x384xf32> -> vector<8x384xf32>
    %12 = arith.addf %9, %11 : vector<8x384xf32>
    %cst_14 = arith.constant 5.000000e-01 : f32
    %13 = vector.broadcast %cst_14 : f32 to vector<8x384xf32>
    %14 = arith.mulf %13, %12 : vector<8x384xf32>
    %15 = math.tanh %14 : vector<8x384xf32>
    %cst_15 = arith.constant 5.000000e-01 : f32
    %16 = vector.broadcast %cst_15 : f32 to vector<8x384xf32>
    %17 = arith.mulf %16, %15 : vector<8x384xf32>
    %cst_16 = arith.constant 5.000000e-01 : f32
    %18 = vector.broadcast %cst_16 : f32 to vector<8x384xf32>
    %19 = arith.addf %17, %18 : vector<8x384xf32>
    %c0_17 = arith.constant 0 : index
    %c384 = arith.constant 384 : index
    %20 = vector.load %arg8[%c0_17, %c384] : memref<64x512xf32, #tpu.memory_space<vmem>>, vector<8x128xf32>
    %c0_18 = arith.constant 0 : index
    %c384_19 = arith.constant 384 : index
    %21 = vector.load %arg3[%c0_18, %c384_19] : memref<128x512xf32, #tpu.memory_space<vmem>>, vector<128x128xf32>
    %cst_20 = arith.constant dense<0.000000e+00> : vector<8x128xf32>
    %22 = tpu.matmul %7, %21, %cst_20 {dimension_numbers = #tpu.dot_dimension_numbers<[1], [0], [0], [1], [0, 0, 1, 1], [], []>} : vector<8x128xf32>, vector<128x128xf32>, vector<8x128xf32> -> vector<8x128xf32>
    %23 = arith.addf %20, %22 : vector<8x128xf32>
    %24 = math.tanh %23 : vector<8x128xf32>
    %25 = vector.extract_strided_slice %19 {offsets = [0, 0], sizes = [8, 128], strides = [1, 1]} : vector<8x384xf32> to vector<8x128xf32>
    %26 = vector.extract_strided_slice %19 {offsets = [0, 128], sizes = [8, 128], strides = [1, 1]} : vector<8x384xf32> to vector<8x128xf32>
    %27 = vector.extract_strided_slice %19 {offsets = [0, 256], sizes = [8, 128], strides = [1, 1]} : vector<8x384xf32> to vector<8x128xf32>
    %28 = arith.mulf %26, %8 : vector<8x128xf32>
    %29 = arith.mulf %25, %24 : vector<8x128xf32>
    %30 = arith.addf %28, %29 : vector<8x128xf32>
    %31 = math.tanh %30 : vector<8x128xf32>
    %32 = arith.mulf %27, %31 : vector<8x128xf32>
    %c8 = arith.constant 8 : index
    %c0_21 = arith.constant 0 : index
    %33 = vector.load %arg8[%c8, %c0_21] : memref<64x512xf32, #tpu.memory_space<vmem>>, vector<8x384xf32>
    %c0_22 = arith.constant 0 : index
    %c0_23 = arith.constant 0 : index
    %34 = vector.load %arg3[%c0_22, %c0_23] : memref<128x512xf32, #tpu.memory_space<vmem>>, vector<128x384xf32>
    %cst_24 = arith.constant dense<0.000000e+00> : vector<8x384xf32>
    %35 = tpu.matmul %32, %34, %cst_24 {dimension_numbers = #tpu.dot_dimension_numbers<[1], [0], [0], [1], [0, 0, 1, 1], [], []>} : vector<8x128xf32>, vector<128x384xf32>, vector<8x384xf32> -> vector<8x384xf32>
    %36 = arith.addf %33, %35 : vector<8x384xf32>
    %cst_25 = arith.constant 5.000000e-01 : f32
    %37 = vector.broadcast %cst_25 : f32 to vector<8x384xf32>
    %38 = arith.mulf %37, %36 : vector<8x384xf32>
    %39 = math.tanh %38 : vector<8x384xf32>
    %cst_26 = arith.constant 5.000000e-01 : f32
    %40 = vector.broadcast %cst_26 : f32 to vector<8x384xf32>
    %41 = arith.mulf %40, %39 : vector<8x384xf32>
    %cst_27 = arith.constant 5.000000e-01 : f32
    %42 = vector.broadcast %cst_27 : f32 to vector<8x384xf32>
    %43 = arith.addf %41, %42 : vector<8x384xf32>
    %c8_28 = arith.constant 8 : index
    %c384_29 = arith.constant 384 : index
    %44 = vector.load %arg8[%c8_28, %c384_29] : memref<64x512xf32, #tpu.memory_space<vmem>>, vector<8x128xf32>
    %c0_30 = arith.constant 0 : index
    %c384_31 = arith.constant 384 : index
    %45 = vector.load %arg3[%c0_30, %c384_31] : memref<128x512xf32, #tpu.memory_space<vmem>>, vector<128x128xf32>
    %cst_32 = arith.constant dense<0.000000e+00> : vector<8x128xf32>
    %46 = tpu.matmul %32, %45, %cst_32 {dimension_numbers = #tpu.dot_dimension_numbers<[1], [0], [0], [1], [0, 0, 1, 1], [], []>} : vector<8x128xf32>, vector<128x128xf32>, vector<8x128xf32> -> vector<8x128xf32>
    %47 = arith.addf %44, %46 : vector<8x128xf32>
    %48 = math.tanh %47 : vector<8x128xf32>
    %49 = vector.extract_strided_slice %43 {offsets = [0, 0], sizes = [8, 128], strides = [1, 1]} : vector<8x384xf32> to vector<8x128xf32>
    %50 = vector.extract_strided_slice %43 {offsets = [0, 128], sizes = [8, 128], strides = [1, 1]} : vector<8x384xf32> to vector<8x128xf32>
    %51 = vector.extract_strided_slice %43 {offsets = [0, 256], sizes = [8, 128], strides = [1, 1]} : vector<8x384xf32> to vector<8x128xf32>
    %52 = arith.mulf %50, %30 : vector<8x128xf32>
    %53 = arith.mulf %49, %48 : vector<8x128xf32>
    %54 = arith.addf %52, %53 : vector<8x128xf32>
    %55 = math.tanh %54 : vector<8x128xf32>
    %56 = arith.mulf %51, %55 : vector<8x128xf32>
    %c16 = arith.constant 16 : index
    %c0_33 = arith.constant 0 : index
    %57 = vector.load %arg8[%c16, %c0_33] : memref<64x512xf32, #tpu.memory_space<vmem>>, vector<8x384xf32>
    %c0_34 = arith.constant 0 : index
    %c0_35 = arith.constant 0 : index
    %58 = vector.load %arg3[%c0_34, %c0_35] : memref<128x512xf32, #tpu.memory_space<vmem>>, vector<128x384xf32>
    %cst_36 = arith.constant dense<0.000000e+00> : vector<8x384xf32>
    %59 = tpu.matmul %56, %58, %cst_36 {dimension_numbers = #tpu.dot_dimension_numbers<[1], [0], [0], [1], [0, 0, 1, 1], [], []>} : vector<8x128xf32>, vector<128x384xf32>, vector<8x384xf32> -> vector<8x384xf32>
    %60 = arith.addf %57, %59 : vector<8x384xf32>
    %cst_37 = arith.constant 5.000000e-01 : f32
    %61 = vector.broadcast %cst_37 : f32 to vector<8x384xf32>
    %62 = arith.mulf %61, %60 : vector<8x384xf32>
    %63 = math.tanh %62 : vector<8x384xf32>
    %cst_38 = arith.constant 5.000000e-01 : f32
    %64 = vector.broadcast %cst_38 : f32 to vector<8x384xf32>
    %65 = arith.mulf %64, %63 : vector<8x384xf32>
    %cst_39 = arith.constant 5.000000e-01 : f32
    %66 = vector.broadcast %cst_39 : f32 to vector<8x384xf32>
    %67 = arith.addf %65, %66 : vector<8x384xf32>
    %c16_40 = arith.constant 16 : index
    %c384_41 = arith.constant 384 : index
    %68 = vector.load %arg8[%c16_40, %c384_41] : memref<64x512xf32, #tpu.memory_space<vmem>>, vector<8x128xf32>
    %c0_42 = arith.constant 0 : index
    %c384_43 = arith.constant 384 : index
    %69 = vector.load %arg3[%c0_42, %c384_43] : memref<128x512xf32, #tpu.memory_space<vmem>>, vector<128x128xf32>
    %cst_44 = arith.constant dense<0.000000e+00> : vector<8x128xf32>
    %70 = tpu.matmul %56, %69, %cst_44 {dimension_numbers = #tpu.dot_dimension_numbers<[1], [0], [0], [1], [0, 0, 1, 1], [], []>} : vector<8x128xf32>, vector<128x128xf32>, vector<8x128xf32> -> vector<8x128xf32>
    %71 = arith.addf %68, %70 : vector<8x128xf32>
    %72 = math.tanh %71 : vector<8x128xf32>
    %73 = vector.extract_strided_slice %67 {offsets = [0, 0], sizes = [8, 128], strides = [1, 1]} : vector<8x384xf32> to vector<8x128xf32>
    %74 = vector.extract_strided_slice %67 {offsets = [0, 128], sizes = [8, 128], strides = [1, 1]} : vector<8x384xf32> to vector<8x128xf32>
    %75 = vector.extract_strided_slice %67 {offsets = [0, 256], sizes = [8, 128], strides = [1, 1]} : vector<8x384xf32> to vector<8x128xf32>
    %76 = arith.mulf %74, %54 : vector<8x128xf32>
    %77 = arith.mulf %73, %72 : vector<8x128xf32>
    %78 = arith.addf %76, %77 : vector<8x128xf32>
    %79 = math.tanh %78 : vector<8x128xf32>
    %80 = arith.mulf %75, %79 : vector<8x128xf32>
    %c24 = arith.constant 24 : index
    %c0_45 = arith.constant 0 : index
    %81 = vector.load %arg8[%c24, %c0_45] : memref<64x512xf32, #tpu.memory_space<vmem>>, vector<8x384xf32>
    %c0_46 = arith.constant 0 : index
    %c0_47 = arith.constant 0 : index
    %82 = vector.load %arg3[%c0_46, %c0_47] : memref<128x512xf32, #tpu.memory_space<vmem>>, vector<128x384xf32>
    %cst_48 = arith.constant dense<0.000000e+00> : vector<8x384xf32>
    %83 = tpu.matmul %80, %82, %cst_48 {dimension_numbers = #tpu.dot_dimension_numbers<[1], [0], [0], [1], [0, 0, 1, 1], [], []>} : vector<8x128xf32>, vector<128x384xf32>, vector<8x384xf32> -> vector<8x384xf32>
    %84 = arith.addf %81, %83 : vector<8x384xf32>
    %cst_49 = arith.constant 5.000000e-01 : f32
    %85 = vector.broadcast %cst_49 : f32 to vector<8x384xf32>
    %86 = arith.mulf %85, %84 : vector<8x384xf32>
    %87 = math.tanh %86 : vector<8x384xf32>
    %cst_50 = arith.constant 5.000000e-01 : f32
    %88 = vector.broadcast %cst_50 : f32 to vector<8x384xf32>
    %89 = arith.mulf %88, %87 : vector<8x384xf32>
    %cst_51 = arith.constant 5.000000e-01 : f32
    %90 = vector.broadcast %cst_51 : f32 to vector<8x384xf32>
    %91 = arith.addf %89, %90 : vector<8x384xf32>
    %c24_52 = arith.constant 24 : index
    %c384_53 = arith.constant 384 : index
    %92 = vector.load %arg8[%c24_52, %c384_53] : memref<64x512xf32, #tpu.memory_space<vmem>>, vector<8x128xf32>
    %c0_54 = arith.constant 0 : index
    %c384_55 = arith.constant 384 : index
    %93 = vector.load %arg3[%c0_54, %c384_55] : memref<128x512xf32, #tpu.memory_space<vmem>>, vector<128x128xf32>
    %cst_56 = arith.constant dense<0.000000e+00> : vector<8x128xf32>
    %94 = tpu.matmul %80, %93, %cst_56 {dimension_numbers = #tpu.dot_dimension_numbers<[1], [0], [0], [1], [0, 0, 1, 1], [], []>} : vector<8x128xf32>, vector<128x128xf32>, vector<8x128xf32> -> vector<8x128xf32>
    %95 = arith.addf %92, %94 : vector<8x128xf32>
    %96 = math.tanh %95 : vector<8x128xf32>
    %97 = vector.extract_strided_slice %91 {offsets = [0, 0], sizes = [8, 128], strides = [1, 1]} : vector<8x384xf32> to vector<8x128xf32>
    %98 = vector.extract_strided_slice %91 {offsets = [0, 128], sizes = [8, 128], strides = [1, 1]} : vector<8x384xf32> to vector<8x128xf32>
    %99 = vector.extract_strided_slice %91 {offsets = [0, 256], sizes = [8, 128], strides = [1, 1]} : vector<8x384xf32> to vector<8x128xf32>
    %100 = arith.mulf %98, %78 : vector<8x128xf32>
    %101 = arith.mulf %97, %96 : vector<8x128xf32>
    %102 = arith.addf %100, %101 : vector<8x128xf32>
    %103 = math.tanh %102 : vector<8x128xf32>
    %104 = arith.mulf %99, %103 : vector<8x128xf32>
    %c32 = arith.constant 32 : index
    %c0_57 = arith.constant 0 : index
    %105 = vector.load %arg8[%c32, %c0_57] : memref<64x512xf32, #tpu.memory_space<vmem>>, vector<8x384xf32>
    %c0_58 = arith.constant 0 : index
    %c0_59 = arith.constant 0 : index
    %106 = vector.load %arg3[%c0_58, %c0_59] : memref<128x512xf32, #tpu.memory_space<vmem>>, vector<128x384xf32>
    %cst_60 = arith.constant dense<0.000000e+00> : vector<8x384xf32>
    %107 = tpu.matmul %104, %106, %cst_60 {dimension_numbers = #tpu.dot_dimension_numbers<[1], [0], [0], [1], [0, 0, 1, 1], [], []>} : vector<8x128xf32>, vector<128x384xf32>, vector<8x384xf32> -> vector<8x384xf32>
    %108 = arith.addf %105, %107 : vector<8x384xf32>
    %cst_61 = arith.constant 5.000000e-01 : f32
    %109 = vector.broadcast %cst_61 : f32 to vector<8x384xf32>
    %110 = arith.mulf %109, %108 : vector<8x384xf32>
    %111 = math.tanh %110 : vector<8x384xf32>
    %cst_62 = arith.constant 5.000000e-01 : f32
    %112 = vector.broadcast %cst_62 : f32 to vector<8x384xf32>
    %113 = arith.mulf %112, %111 : vector<8x384xf32>
    %cst_63 = arith.constant 5.000000e-01 : f32
    %114 = vector.broadcast %cst_63 : f32 to vector<8x384xf32>
    %115 = arith.addf %113, %114 : vector<8x384xf32>
    %c32_64 = arith.constant 32 : index
    %c384_65 = arith.constant 384 : index
    %116 = vector.load %arg8[%c32_64, %c384_65] : memref<64x512xf32, #tpu.memory_space<vmem>>, vector<8x128xf32>
    %c0_66 = arith.constant 0 : index
    %c384_67 = arith.constant 384 : index
    %117 = vector.load %arg3[%c0_66, %c384_67] : memref<128x512xf32, #tpu.memory_space<vmem>>, vector<128x128xf32>
    %cst_68 = arith.constant dense<0.000000e+00> : vector<8x128xf32>
    %118 = tpu.matmul %104, %117, %cst_68 {dimension_numbers = #tpu.dot_dimension_numbers<[1], [0], [0], [1], [0, 0, 1, 1], [], []>} : vector<8x128xf32>, vector<128x128xf32>, vector<8x128xf32> -> vector<8x128xf32>
    %119 = arith.addf %116, %118 : vector<8x128xf32>
    %120 = math.tanh %119 : vector<8x128xf32>
    %121 = vector.extract_strided_slice %115 {offsets = [0, 0], sizes = [8, 128], strides = [1, 1]} : vector<8x384xf32> to vector<8x128xf32>
    %122 = vector.extract_strided_slice %115 {offsets = [0, 128], sizes = [8, 128], strides = [1, 1]} : vector<8x384xf32> to vector<8x128xf32>
    %123 = vector.extract_strided_slice %115 {offsets = [0, 256], sizes = [8, 128], strides = [1, 1]} : vector<8x384xf32> to vector<8x128xf32>
    %124 = arith.mulf %122, %102 : vector<8x128xf32>
    %125 = arith.mulf %121, %120 : vector<8x128xf32>
    %126 = arith.addf %124, %125 : vector<8x128xf32>
    %127 = math.tanh %126 : vector<8x128xf32>
    %128 = arith.mulf %123, %127 : vector<8x128xf32>
    %c40 = arith.constant 40 : index
    %c0_69 = arith.constant 0 : index
    %129 = vector.load %arg8[%c40, %c0_69] : memref<64x512xf32, #tpu.memory_space<vmem>>, vector<8x384xf32>
    %c0_70 = arith.constant 0 : index
    %c0_71 = arith.constant 0 : index
    %130 = vector.load %arg3[%c0_70, %c0_71] : memref<128x512xf32, #tpu.memory_space<vmem>>, vector<128x384xf32>
    %cst_72 = arith.constant dense<0.000000e+00> : vector<8x384xf32>
    %131 = tpu.matmul %128, %130, %cst_72 {dimension_numbers = #tpu.dot_dimension_numbers<[1], [0], [0], [1], [0, 0, 1, 1], [], []>} : vector<8x128xf32>, vector<128x384xf32>, vector<8x384xf32> -> vector<8x384xf32>
    %132 = arith.addf %129, %131 : vector<8x384xf32>
    %cst_73 = arith.constant 5.000000e-01 : f32
    %133 = vector.broadcast %cst_73 : f32 to vector<8x384xf32>
    %134 = arith.mulf %133, %132 : vector<8x384xf32>
    %135 = math.tanh %134 : vector<8x384xf32>
    %cst_74 = arith.constant 5.000000e-01 : f32
    %136 = vector.broadcast %cst_74 : f32 to vector<8x384xf32>
    %137 = arith.mulf %136, %135 : vector<8x384xf32>
    %cst_75 = arith.constant 5.000000e-01 : f32
    %138 = vector.broadcast %cst_75 : f32 to vector<8x384xf32>
    %139 = arith.addf %137, %138 : vector<8x384xf32>
    %c40_76 = arith.constant 40 : index
    %c384_77 = arith.constant 384 : index
    %140 = vector.load %arg8[%c40_76, %c384_77] : memref<64x512xf32, #tpu.memory_space<vmem>>, vector<8x128xf32>
    %c0_78 = arith.constant 0 : index
    %c384_79 = arith.constant 384 : index
    %141 = vector.load %arg3[%c0_78, %c384_79] : memref<128x512xf32, #tpu.memory_space<vmem>>, vector<128x128xf32>
    %cst_80 = arith.constant dense<0.000000e+00> : vector<8x128xf32>
    %142 = tpu.matmul %128, %141, %cst_80 {dimension_numbers = #tpu.dot_dimension_numbers<[1], [0], [0], [1], [0, 0, 1, 1], [], []>} : vector<8x128xf32>, vector<128x128xf32>, vector<8x128xf32> -> vector<8x128xf32>
    %143 = arith.addf %140, %142 : vector<8x128xf32>
    %144 = math.tanh %143 : vector<8x128xf32>
    %145 = vector.extract_strided_slice %139 {offsets = [0, 0], sizes = [8, 128], strides = [1, 1]} : vector<8x384xf32> to vector<8x128xf32>
    %146 = vector.extract_strided_slice %139 {offsets = [0, 128], sizes = [8, 128], strides = [1, 1]} : vector<8x384xf32> to vector<8x128xf32>
    %147 = vector.extract_strided_slice %139 {offsets = [0, 256], sizes = [8, 128], strides = [1, 1]} : vector<8x384xf32> to vector<8x128xf32>
    %148 = arith.mulf %146, %126 : vector<8x128xf32>
    %149 = arith.mulf %145, %144 : vector<8x128xf32>
    %150 = arith.addf %148, %149 : vector<8x128xf32>
    %151 = math.tanh %150 : vector<8x128xf32>
    %152 = arith.mulf %147, %151 : vector<8x128xf32>
    %c48 = arith.constant 48 : index
    %c0_81 = arith.constant 0 : index
    %153 = vector.load %arg8[%c48, %c0_81] : memref<64x512xf32, #tpu.memory_space<vmem>>, vector<8x384xf32>
    %c0_82 = arith.constant 0 : index
    %c0_83 = arith.constant 0 : index
    %154 = vector.load %arg3[%c0_82, %c0_83] : memref<128x512xf32, #tpu.memory_space<vmem>>, vector<128x384xf32>
    %cst_84 = arith.constant dense<0.000000e+00> : vector<8x384xf32>
    %155 = tpu.matmul %152, %154, %cst_84 {dimension_numbers = #tpu.dot_dimension_numbers<[1], [0], [0], [1], [0, 0, 1, 1], [], []>} : vector<8x128xf32>, vector<128x384xf32>, vector<8x384xf32> -> vector<8x384xf32>
    %156 = arith.addf %153, %155 : vector<8x384xf32>
    %cst_85 = arith.constant 5.000000e-01 : f32
    %157 = vector.broadcast %cst_85 : f32 to vector<8x384xf32>
    %158 = arith.mulf %157, %156 : vector<8x384xf32>
    %159 = math.tanh %158 : vector<8x384xf32>
    %cst_86 = arith.constant 5.000000e-01 : f32
    %160 = vector.broadcast %cst_86 : f32 to vector<8x384xf32>
    %161 = arith.mulf %160, %159 : vector<8x384xf32>
    %cst_87 = arith.constant 5.000000e-01 : f32
    %162 = vector.broadcast %cst_87 : f32 to vector<8x384xf32>
    %163 = arith.addf %161, %162 : vector<8x384xf32>
    %c48_88 = arith.constant 48 : index
    %c384_89 = arith.constant 384 : index
    %164 = vector.load %arg8[%c48_88, %c384_89] : memref<64x512xf32, #tpu.memory_space<vmem>>, vector<8x128xf32>
    %c0_90 = arith.constant 0 : index
    %c384_91 = arith.constant 384 : index
    %165 = vector.load %arg3[%c0_90, %c384_91] : memref<128x512xf32, #tpu.memory_space<vmem>>, vector<128x128xf32>
    %cst_92 = arith.constant dense<0.000000e+00> : vector<8x128xf32>
    %166 = tpu.matmul %152, %165, %cst_92 {dimension_numbers = #tpu.dot_dimension_numbers<[1], [0], [0], [1], [0, 0, 1, 1], [], []>} : vector<8x128xf32>, vector<128x128xf32>, vector<8x128xf32> -> vector<8x128xf32>
    %167 = arith.addf %164, %166 : vector<8x128xf32>
    %168 = math.tanh %167 : vector<8x128xf32>
    %169 = vector.extract_strided_slice %163 {offsets = [0, 0], sizes = [8, 128], strides = [1, 1]} : vector<8x384xf32> to vector<8x128xf32>
    %170 = vector.extract_strided_slice %163 {offsets = [0, 128], sizes = [8, 128], strides = [1, 1]} : vector<8x384xf32> to vector<8x128xf32>
    %171 = vector.extract_strided_slice %163 {offsets = [0, 256], sizes = [8, 128], strides = [1, 1]} : vector<8x384xf32> to vector<8x128xf32>
    %172 = arith.mulf %170, %150 : vector<8x128xf32>
    %173 = arith.mulf %169, %168 : vector<8x128xf32>
    %174 = arith.addf %172, %173 : vector<8x128xf32>
    %175 = math.tanh %174 : vector<8x128xf32>
    %176 = arith.mulf %171, %175 : vector<8x128xf32>
    %c56 = arith.constant 56 : index
    %c0_93 = arith.constant 0 : index
    %177 = vector.load %arg8[%c56, %c0_93] : memref<64x512xf32, #tpu.memory_space<vmem>>, vector<8x384xf32>
    %c0_94 = arith.constant 0 : index
    %c0_95 = arith.constant 0 : index
    %178 = vector.load %arg3[%c0_94, %c0_95] : memref<128x512xf32, #tpu.memory_space<vmem>>, vector<128x384xf32>
    %cst_96 = arith.constant dense<0.000000e+00> : vector<8x384xf32>
    %179 = tpu.matmul %176, %178, %cst_96 {dimension_numbers = #tpu.dot_dimension_numbers<[1], [0], [0], [1], [0, 0, 1, 1], [], []>} : vector<8x128xf32>, vector<128x384xf32>, vector<8x384xf32> -> vector<8x384xf32>
    %180 = arith.addf %177, %179 : vector<8x384xf32>
    %cst_97 = arith.constant 5.000000e-01 : f32
    %181 = vector.broadcast %cst_97 : f32 to vector<8x384xf32>
    %182 = arith.mulf %181, %180 : vector<8x384xf32>
    %183 = math.tanh %182 : vector<8x384xf32>
    %cst_98 = arith.constant 5.000000e-01 : f32
    %184 = vector.broadcast %cst_98 : f32 to vector<8x384xf32>
    %185 = arith.mulf %184, %183 : vector<8x384xf32>
    %cst_99 = arith.constant 5.000000e-01 : f32
    %186 = vector.broadcast %cst_99 : f32 to vector<8x384xf32>
    %187 = arith.addf %185, %186 : vector<8x384xf32>
    %c56_100 = arith.constant 56 : index
    %c384_101 = arith.constant 384 : index
    %188 = vector.load %arg8[%c56_100, %c384_101] : memref<64x512xf32, #tpu.memory_space<vmem>>, vector<8x128xf32>
    %c0_102 = arith.constant 0 : index
    %c384_103 = arith.constant 384 : index
    %189 = vector.load %arg3[%c0_102, %c384_103] : memref<128x512xf32, #tpu.memory_space<vmem>>, vector<128x128xf32>
    %cst_104 = arith.constant dense<0.000000e+00> : vector<8x128xf32>
    %190 = tpu.matmul %176, %189, %cst_104 {dimension_numbers = #tpu.dot_dimension_numbers<[1], [0], [0], [1], [0, 0, 1, 1], [], []>} : vector<8x128xf32>, vector<128x128xf32>, vector<8x128xf32> -> vector<8x128xf32>
    %191 = arith.addf %188, %190 : vector<8x128xf32>
    %192 = math.tanh %191 : vector<8x128xf32>
    %193 = vector.extract_strided_slice %187 {offsets = [0, 0], sizes = [8, 128], strides = [1, 1]} : vector<8x384xf32> to vector<8x128xf32>
    %194 = vector.extract_strided_slice %187 {offsets = [0, 128], sizes = [8, 128], strides = [1, 1]} : vector<8x384xf32> to vector<8x128xf32>
    %195 = vector.extract_strided_slice %187 {offsets = [0, 256], sizes = [8, 128], strides = [1, 1]} : vector<8x384xf32> to vector<8x128xf32>
    %196 = arith.mulf %194, %174 : vector<8x128xf32>
    %197 = arith.mulf %193, %192 : vector<8x128xf32>
    %198 = arith.addf %196, %197 : vector<8x128xf32>
    %199 = math.tanh %198 : vector<8x128xf32>
    %200 = arith.mulf %195, %199 : vector<8x128xf32>
    %c0_105 = arith.constant 0 : index
    %c0_106 = arith.constant 0 : index
    %201 = vector.load %arg5[%c0_105, %c0_106] : memref<128x128xf32, #tpu.memory_space<vmem>>, vector<128x128xf32>
    %cst_107 = arith.constant dense<0.000000e+00> : vector<8x128xf32>
    %202 = tpu.matmul %200, %201, %cst_107 {dimension_numbers = #tpu.dot_dimension_numbers<[1], [0], [0], [1], [0, 0, 1, 1], [], []>} : vector<8x128xf32>, vector<128x128xf32>, vector<8x128xf32> -> vector<8x128xf32>
    %c0_108 = arith.constant 0 : index
    %c0_109 = arith.constant 0 : index
    %203 = vector.load %arg6[%c0_108, %c0_109] : memref<1x128xf32, #tpu.memory_space<vmem>>, vector<1x128xf32>
    %204 = vector.broadcast %203 : vector<1x128xf32> to vector<8x128xf32>
    %205 = arith.addf %202, %204 : vector<8x128xf32>
    %c0_110 = arith.constant 0 : index
    %c0_111 = arith.constant 0 : index
    %206 = vector.load %arg7[%c0_110, %c0_111] : memref<8x128xf32, #tpu.memory_space<vmem>>, vector<8x128xf32>
    tpu.vector_store %arg7[%c0_110, %c0_111], %205 {strides = array<i32>} : memref<8x128xf32, #tpu.memory_space<vmem>>, vector<8x128xf32>,
    return
  }
  func.func @transform_0(%arg0: i32) -> (i32, i32) {
    %c0_i32 = arith.constant 0 : i32
    %c0_i32_0 = arith.constant 0 : i32
    %c0_i32_1 = arith.constant 0 : i32
    return %c0_i32, %c0_i32_0 : i32, i32
  }
  func.func @transform_1(%arg0: i32) -> (i32, i32) {
    %c0_i32 = arith.constant 0 : i32
    %c0_i32_0 = arith.constant 0 : i32
    %c0_i32_1 = arith.constant 0 : i32
    return %c0_i32, %c0_i32_0 : i32, i32
  }
  func.func @transform_2(%arg0: i32) -> (i32, i32) {
    %c0_i32 = arith.constant 0 : i32
    %c0_i32_0 = arith.constant 0 : i32
    %c0_i32_1 = arith.constant 0 : i32
    return %c0_i32, %c0_i32_0 : i32, i32
  }
  func.func @transform_3(%arg0: i32) -> (i32, i32) {
    %c0_i32 = arith.constant 0 : i32
    %c0_i32_0 = arith.constant 0 : i32
    %c0_i32_1 = arith.constant 0 : i32
    return %c0_i32, %c0_i32_0 : i32, i32
  }
  func.func @transform_4(%arg0: i32) -> (i32, i32) {
    %c0_i32 = arith.constant 0 : i32
    %c0_i32_0 = arith.constant 0 : i32
    %c0_i32_1 = arith.constant 0 : i32
    return %c0_i32, %c0_i32_0 : i32, i32
  }
  func.func @transform_5(%arg0: i32) -> (i32, i32) {
    %c0_i32 = arith.constant 0 : i32
    %c0_i32_0 = arith.constant 0 : i32
    %c0_i32_1 = arith.constant 0 : i32
    return %c0_i32, %c0_i32_0 : i32, i32
  }
  func.func @transform_6(%arg0: i32) -> (i32, i32) {
    %c0_i32 = arith.constant 0 : i32
    %c0_i32_0 = arith.constant 0 : i32
    %c0_i32_1 = arith.constant 0 : i32
    return %c0_i32, %c0_i32_0 : i32, i32
  }
}

</mosaic_0001>

<llo_original>
// kernel: _lstm_forward.1
$region0: #{_lstm_forward.1}
  #allocation0 [shape = 'u32[]', space=smem, size = 0x4, offset = 0x4, fixed_abs, tag = 'smem constant byte address 0x4 - core index']
  #allocation1 [shape = 'u32[144,128]{1,0:T(1,128)}', space=vmem, size = 0x12000, scoped, tag = 'internal scratch']
  #allocation2 [shape = 'f32[64,512]{1,0:T(8,128)}', space=vmem, size = 0x20000, scoped, tag = 'scratch operand']
  %s0 = inlined_call_operand.vmem [shape: f32[64,2], index: 0, kind: input, shape index: {}]
  %s1 = inlined_call_operand.vmem [shape: f32[2,512], index: 1, kind: input, shape index: {}]
  %s2 = inlined_call_operand.hbm [shape: f32[128,512], index: 2, kind: input, shape index: {}]
  %s3 = inlined_call_operand.vmem [shape: f32[1,512], index: 3, kind: input, shape index: {}]
  %s4 = inlined_call_operand.hbm [shape: f32[128,128], index: 4, kind: input, shape index: {}]
  %s5 = inlined_call_operand.vmem [shape: f32[1,128], index: 5, kind: input, shape index: {}]
  %s6 = inlined_call_operand.vmem [shape: f32[8,128], index: 6, kind: output, shape index: {}]
  %s7 = sld [smem:[#allocation0]]
  $region42: #{_lstm_forward.1} parent=0
    _
  %s9 = ssub.s32 1, %s7
  %s10 = scalar_select 0, %s9, %s7
  $region1: #{_lstm_forward.1} parent=0
    #allocation3 [shape = 'u8[262144]{0}', space=vmem, size = 0x40000, scoped, tag = 'input window, operand 2, single buffered']
    #allocation4 [shape = 's32[1]{0}', space=sflag, size = 0x4, scoped, tag = 'scoped memory for _lstm_forward.1']
    #allocation5 [shape = 'u8[65536]{0}', space=vmem, size = 0x10000, scoped, tag = 'input window, operand 4, single buffered']
    #allocation6 [shape = 's32[1]{0}', space=sflag, size = 0x4, scoped, tag = 'scoped memory for _lstm_forward.1']
    %11 = vsyncpa [#allocation4], 0
    %12 = vsyncpa [#allocation6], 0
    // Predicated region
    $region2: #{_lstm_forward.1} parent=1 // pred_check
      _
    $region3: #{_lstm_forward.1} parent=1 // pred_check_branch
      %14 = sbr.rel (0) target = $region5
    $region4: #{_lstm_forward.1} parent=1 // pred_region
      _
    $region5: #{_lstm_forward.1} parent=1 // pred_fallthru
      _
    // Predicated region
    $region6: #{_lstm_forward.1} parent=1 // pred_check
      _
    $region7: #{_lstm_forward.1} parent=1 // pred_check_branch
      %16 = sbr.rel (0) target = $region9
    $region8: #{_lstm_forward.1} parent=1 // pred_region
      _
    $region9: #{_lstm_forward.1} parent=1 // pred_fallthru
      _
    // Predicated region
    $region10: #{_lstm_forward.1} parent=1 // pred_check
      _
    $region11: #{_lstm_forward.1} parent=1 // pred_check_branch
      %18 = sbr.rel (0) target = $region13
    $region12: #{_lstm_forward.1} parent=1 // pred_region
      %s20 = ssub.s32 8192, 8192
      %21 = vsyncadd [#allocation4], %s20
      %s22 = sshll.u32 [#allocation3], 4
      %s23 = int_to_ptr.vmem [resolvable:$true] %s22
      %28 = dma.hbm_to_vmem [thread:$0]  %s2, 8192, %s23, [#allocation4], 512, 512, 32
    $region13: #{_lstm_forward.1} parent=1 // pred_fallthru
      _
    // Predicated region
    $region14: #{_lstm_forward.1} parent=1 // pred_check
      _
    $region15: #{_lstm_forward.1} parent=1 // pred_check_branch
      %30 = sbr.rel (0) target = $region17
    $region16: #{_lstm_forward.1} parent=1 // pred_region
      _
    $region17: #{_lstm_forward.1} parent=1 // pred_fallthru
      _
    // Predicated region
    $region18: #{_lstm_forward.1} parent=1 // pred_check
      _
    $region19: #{_lstm_forward.1} parent=1 // pred_check_branch
      %32 = sbr.rel (0) target = $region21
    $region20: #{_lstm_forward.1} parent=1 // pred_region
      %s34 = ssub.s32 2048, 2048
      %35 = vsyncadd [#allocation6], %s34
      %s36 = sshll.u32 [#allocation5], 4
      %s37 = int_to_ptr.vmem [resolvable:$true] %s36
      %42 = dma.hbm_to_vmem [thread:$0]  %s4, 2048, %s37, [#allocation6], 128, 128, 8
    $region21: #{_lstm_forward.1} parent=1 // pred_fallthru
      _
    // Predicated region
    $region22: #{_lstm_forward.1} parent=1 // pred_check
      _
    $region23: #{_lstm_forward.1} parent=1 // pred_check_branch
      %44 = sbr.rel (0) target = $region25
    $region24: #{_lstm_forward.1} parent=1 // pred_region
      _
    $region25: #{_lstm_forward.1} parent=1 // pred_fallthru
      _
    // Predicated region
    $region26: #{_lstm_forward.1} parent=1 // pred_check
      _
    $region27: #{_lstm_forward.1} parent=1 // pred_check_branch
      %46 = sbr.rel (0) target = $region29
    $region28: #{_lstm_forward.1} parent=1 // pred_region
      %47 = dma.done [#allocation4], 8192
    $region29: #{_lstm_forward.1} parent=1 // pred_fallthru
      _
    // Predicated region
    $region30: #{_lstm_forward.1} parent=1 // pred_check
      _
    $region31: #{_lstm_forward.1} parent=1 // pred_check_branch
      %49 = sbr.rel (0) target = $region33
    $region32: #{_lstm_forward.1} parent=1 // pred_region
      %50 = dma.done [#allocation6], 2048
    $region33: #{_lstm_forward.1} parent=1 // pred_fallthru
      _
    %v51 = vld [vmem:[%s0] sm:$0xff]
    %v52 = vld [vmem:[%s0 + $0x8] sm:$0xff]
    %v53 = vld [vmem:[%s0 + $0x10] sm:$0xff]
    %v54 = vld [vmem:[%s0 + $0x18] sm:$0xff]
    %v55 = vld [vmem:[%s0 + $0x20] sm:$0xff]
    %v56 = vld [vmem:[%s0 + $0x28] sm:$0xff]
    %v57 = vld [vmem:[%s0 + $0x30] sm:$0xff]
    %v58 = vld [vmem:[%s0 + $0x38] sm:$0xff]
    %v59 = vld [vmem:[%s1] sm:$0xff]
    %v60 = vld [vmem:[%s3] sm:$0xf]
    %v62 = vlaneseq
    %v63 = vshrl.u32 %v62, 7
    %v64 = vsub.s32 0, %v63
    %v65 = vrot.slane %v60, %v64
    %v66 = vlaneseq
    %v67 = vshrl.u32 %v66, 7
    %v68 = vsub.s32 1, %v67
    %v69 = vrot.slane %v60, %v68
    %v70 = vlaneseq
    %v71 = vshrl.u32 %v70, 7
    %v72 = vsub.s32 2, %v71
    %v73 = vrot.slane %v60, %v72
    %v74 = vlaneseq
    %v75 = vshrl.u32 %v74, 7
    %v76 = vsub.s32 3, %v75
    %v77 = vrot.slane %v60, %v76
    %v83 = vcombine.high %v59, %v59
    %v85 = vunpack.c.l.s4 1983009808
    %v86 = vunpack.c.0.s8 %v85
    %v87 = vlaneseq
    %v88 = vshrl.u32 %v87, 7
    %v89 = vsub.s32 %v86, %v88
    %v90 = vrot.slane %v59, %v89
    %v92 = vunpack.c.l.s4 1983009808
    %v93 = vunpack.c.0.s8 %v92
    %v94 = vlaneseq
    %v95 = vshrl.u32 %v94, 7
    %v96 = vsub.s32 %v93, %v95
    %v97 = vrot.slane %v83, %v96
    %v98 = vcombine.high %v90, %v90
    %v99 = vcombine.high %v97, %v97
    %vm100 = vcmask 15360
    %v102 = vsel %vm100, %v51, 0
    %v105 = vsel %vm100, %v52, 0
    %v108 = vsel %vm100, %v53, 0
    %v111 = vsel %vm100, %v54, 0
    %v114 = vsel %vm100, %v55, 0
    %v117 = vsel %vm100, %v56, 0
    %v120 = vsel %vm100, %v57, 0
    %v123 = vsel %vm100, %v58, 0
    %vm125 = vcmask 1041408
    %v126 = vsel %vm125, %v90, 0
    %v128 = vsel %vm125, %v98, 0
    %v130 = vsel %vm125, %v97, 0
    %v132 = vsel %vm125, %v99, 0
    %134 = vmatprep.subr.mxu0 %v128
    %135 = vmatpush1.msra.mxu0 %v126
    %136 = vmatprep.subr.mxu0 0.0
    %137 = vmatpush1.msra.mxu0 0.0
    %138 = vmatprep.subr.mxu0 0.0
    %139 = vmatpush1.msra.mxu0 0.0
    %140 = vmatprep.subr.mxu0 0.0
    %141 = vmatpush1.msra.mxu0 0.0
    %142 = vmatprep.subr.mxu0 0.0
    %143 = vmatpush1.msra.mxu0 0.0
    %144 = vmatprep.subr.mxu0 0.0
    %145 = vmatpush1.msra.mxu0 0.0
    %146 = vmatprep.subr.mxu0 0.0
    %147 = vmatpush1.msra.mxu0 0.0
    %148 = vmatprep.subr.mxu0 0.0
    %149 = vmatpush1.msra.mxu0 0.0
    %150 = vmatprep.subr.mxu0 0.0
    %151 = vmatpush1.msra.mxu0 0.0
    %152 = vmatprep.subr.mxu0 0.0
    %153 = vmatpush1.msra.mxu0 0.0
    %154 = vmatprep.subr.mxu0 0.0
    %155 = vmatpush1.msra.mxu0 0.0
    %156 = vmatprep.subr.mxu0 0.0
    %157 = vmatpush1.msra.mxu0 0.0
    %158 = vmatprep.subr.mxu0 0.0
    %159 = vmatpush1.msra.mxu0 0.0
    %160 = vmatprep.subr.mxu0 0.0
    %161 = vmatpush1.msra.mxu0 0.0
    %162 = vmatprep.subr.mxu0 0.0
    %163 = vmatpush1.msra.mxu0 0.0
    %164 = vmatprep.subr.mxu0 0.0
    %165 = vmatpush1.msra.mxu0 0.0
    %166 = vmatprep.subr.mxu0 0.0
    %167 = vmatpush1.msra.mxu0 0.0
    %168 = vmatprep.subr.mxu0 0.0
    %169 = vmatpush1.msra.mxu0 0.0
    %170 = vmatprep.subr.mxu0 0.0
    %171 = vmatpush1.msra.mxu0 0.0
    %172 = vmatprep.subr.mxu0 0.0
    %173 = vmatpush1.msra.mxu0 0.0
    %174 = vmatprep.subr.mxu0 0.0
    %175 = vmatpush1.msra.mxu0 0.0
    %176 = vmatprep.subr.mxu0 0.0
    %177 = vmatpush1.msra.mxu0 0.0
    %178 = vmatprep.subr.mxu0 0.0
    %179 = vmatpush1.msra.mxu0 0.0
    %180 = vmatprep.subr.mxu0 0.0
    %181 = vmatpush1.msra.mxu0 0.0
    %182 = vmatprep.subr.mxu0 0.0
    %183 = vmatpush1.msra.mxu0 0.0
    %184 = vmatprep.subr.mxu0 0.0
    %185 = vmatpush1.msra.mxu0 0.0
    %186 = vmatprep.subr.mxu0 0.0
    %187 = vmatpush1.msra.mxu0 0.0
    %188 = vmatprep.subr.mxu0 0.0
    %189 = vmatpush1.msra.mxu0 0.0
    %190 = vmatprep.subr.mxu0 0.0
    %191 = vmatpush1.msra.mxu0 0.0
    %192 = vmatprep.subr.mxu0 0.0
    %193 = vmatpush1.msra.mxu0 0.0
    %194 = vmatprep.subr.mxu0 0.0
    %195 = vmatpush1.msra.mxu0 0.0
    %196 = vmatprep.subr.mxu0 0.0
    %197 = vmatpush1.msra.mxu0 0.0
    %198 = vmatprep.mubr.f32.mxu0 0.0
    %199 = vmatmul.mubr.f32.gmra.mrb[0].mxu0 %v102
    %v200 = vpop.f32.mrb[0].mxu0
    %v201 = vadd.f32 %v65, %v200
    %v202 = vpop.f32.mrb[0].mxu0
    %v203 = vadd.f32 %v69, %v202
    %204 = vmatprep.mubr.f32.mxu0 0.0
    %205 = vmatmul.mubr.f32.gmra.mrb[0].mxu0 %v105
    %v206 = vpop.f32.mrb[0].mxu0
    %v207 = vadd.f32 %v65, %v206
    %v208 = vpop.f32.mrb[0].mxu0
    %v209 = vadd.f32 %v69, %v208
    %210 = vmatprep.mubr.f32.mxu0 0.0
    %211 = vmatmul.mubr.f32.gmra.mrb[0].mxu0 %v108
    %v212 = vpop.f32.mrb[0].mxu0
    %v213 = vadd.f32 %v65, %v212
    %v214 = vpop.f32.mrb[0].mxu0
    %v215 = vadd.f32 %v69, %v214
    %216 = vmatprep.mubr.f32.mxu0 0.0
    %217 = vmatmul.mubr.f32.gmra.mrb[0].mxu0 %v111
    %v218 = vpop.f32.mrb[0].mxu0
    %v219 = vadd.f32 %v65, %v218
    %v220 = vpop.f32.mrb[0].mxu0
    %v221 = vadd.f32 %v69, %v220
    %222 = vmatprep.mubr.f32.mxu0 0.0
    %223 = vmatmul.mubr.f32.gmra.mrb[0].mxu0 %v114
    %v224 = vpop.f32.mrb[0].mxu0
    %v225 = vadd.f32 %v65, %v224
    %v226 = vpop.f32.mrb[0].mxu0
    %v227 = vadd.f32 %v69, %v226
    %228 = vmatprep.mubr.f32.mxu0 0.0
    %229 = vmatmul.mubr.f32.gmra.mrb[0].mxu0 %v117
    %v230 = vpop.f32.mrb[0].mxu0
    %v231 = vadd.f32 %v65, %v230
    %v232 = vpop.f32.mrb[0].mxu0
    %v233 = vadd.f32 %v69, %v232
    %234 = vmatprep.mubr.f32.mxu0 0.0
    %235 = vmatmul.mubr.f32.gmra.mrb[0].mxu0 %v120
    %v236 = vpop.f32.mrb[0].mxu0
    %v237 = vadd.f32 %v65, %v236
    %v238 = vpop.f32.mrb[0].mxu0
    %v239 = vadd.f32 %v69, %v238
    %240 = vmatprep.mubr.f32.mxu0 0.0
    %241 = vmatmul.mubr.f32.gmra.mrb[0].mxu0 %v123
    %v242 = vpop.f32.mrb[0].mxu0
    %v243 = vadd.f32 %v65, %v242
    %v244 = vpop.f32.mrb[0].mxu0
    %v245 = vadd.f32 %v69, %v244
    %246 = vdwg.mxu0
    %247 = vmatprep.subr.mxu0 %v132
    %248 = vmatpush1.msra.mxu0 %v130
    %249 = vmatprep.subr.mxu0 0.0
    %250 = vmatpush1.msra.mxu0 0.0
    %251 = vmatprep.subr.mxu0 0.0
    %252 = vmatpush1.msra.mxu0 0.0
    %253 = vmatprep.subr.mxu0 0.0
    %254 = vmatpush1.msra.mxu0 0.0
    %255 = vmatprep.subr.mxu0 0.0
    %256 = vmatpush1.msra.mxu0 0.0
    %257 = vmatprep.subr.mxu0 0.0
    %258 = vmatpush1.msra.mxu0 0.0
    %259 = vmatprep.subr.mxu0 0.0
    %260 = vmatpush1.msra.mxu0 0.0
    %261 = vmatprep.subr.mxu0 0.0
    %262 = vmatpush1.msra.mxu0 0.0
    %263 = vmatprep.subr.mxu0 0.0
    %264 = vmatpush1.msra.mxu0 0.0
    %265 = vmatprep.subr.mxu0 0.0
    %266 = vmatpush1.msra.mxu0 0.0
    %267 = vmatprep.subr.mxu0 0.0
    %268 = vmatpush1.msra.mxu0 0.0
    %269 = vmatprep.subr.mxu0 0.0
    %270 = vmatpush1.msra.mxu0 0.0
    %271 = vmatprep.subr.mxu0 0.0
    %272 = vmatpush1.msra.mxu0 0.0
    %273 = vmatprep.subr.mxu0 0.0
    %274 = vmatpush1.msra.mxu0 0.0
    %275 = vmatprep.subr.mxu0 0.0
    %276 = vmatpush1.msra.mxu0 0.0
    %277 = vmatprep.subr.mxu0 0.0
    %278 = vmatpush1.msra.mxu0 0.0
    %279 = vmatprep.subr.mxu0 0.0
    %280 = vmatpush1.msra.mxu0 0.0
    %281 = vmatprep.subr.mxu0 0.0
    %282 = vmatpush1.msra.mxu0 0.0
    %283 = vmatprep.subr.mxu0 0.0
    %284 = vmatpush1.msra.mxu0 0.0
    %285 = vmatprep.subr.mxu0 0.0
    %286 = vmatpush1.msra.mxu0 0.0
    %287 = vmatprep.subr.mxu0 0.0
    %288 = vmatpush1.msra.mxu0 0.0
    %289 = vmatprep.subr.mxu0 0.0
    %290 = vmatpush1.msra.mxu0 0.0
    %291 = vmatprep.subr.mxu0 0.0
    %292 = vmatpush1.msra.mxu0 0.0
    %293 = vmatprep.subr.mxu0 0.0
    %294 = vmatpush1.msra.mxu0 0.0
    %295 = vmatprep.subr.mxu0 0.0
    %296 = vmatpush1.msra.mxu0 0.0
    %297 = vmatprep.subr.mxu0 0.0
    %298 = vmatpush1.msra.mxu0 0.0
    %299 = vmatprep.subr.mxu0 0.0
    %300 = vmatpush1.msra.mxu0 0.0
    %301 = vmatprep.subr.mxu0 0.0
    %302 = vmatpush1.msra.mxu0 0.0
    %303 = vmatprep.subr.mxu0 0.0
    %304 = vmatpush1.msra.mxu0 0.0
    %305 = vmatprep.subr.mxu0 0.0
    %306 = vmatpush1.msra.mxu0 0.0
    %307 = vmatprep.subr.mxu0 0.0
    %308 = vmatpush1.msra.mxu0 0.0
    %309 = vmatprep.subr.mxu0 0.0
    %310 = vmatpush1.msra.mxu0 0.0
    %311 = vmatprep.mubr.f32.mxu0 0.0
    %312 = vmatmul.mubr.f32.gmra.mrb[0].mxu0 %v102
    %v313 = vpop.f32.mrb[0].mxu0
    %v314 = vadd.f32 %v73, %v313
    %v315 = vpop.f32.mrb[0].mxu0
    %v316 = vadd.f32 %v77, %v315
    %317 = vmatprep.mubr.f32.mxu0 0.0
    %318 = vmatmul.mubr.f32.gmra.mrb[0].mxu0 %v105
    %v319 = vpop.f32.mrb[0].mxu0
    %v320 = vadd.f32 %v73, %v319
    %v321 = vpop.f32.mrb[0].mxu0
    %v322 = vadd.f32 %v77, %v321
    %323 = vmatprep.mubr.f32.mxu0 0.0
    %324 = vmatmul.mubr.f32.gmra.mrb[0].mxu0 %v108
    %v325 = vpop.f32.mrb[0].mxu0
    %v326 = vadd.f32 %v73, %v325
    %v327 = vpop.f32.mrb[0].mxu0
    %v328 = vadd.f32 %v77, %v327
    %329 = vmatprep.mubr.f32.mxu0 0.0
    %330 = vmatmul.mubr.f32.gmra.mrb[0].mxu0 %v111
    %v331 = vpop.f32.mrb[0].mxu0
    %v332 = vadd.f32 %v73, %v331
    %v333 = vpop.f32.mrb[0].mxu0
    %v334 = vadd.f32 %v77, %v333
    %335 = vmatprep.mubr.f32.mxu0 0.0
    %336 = vmatmul.mubr.f32.gmra.mrb[0].mxu0 %v114
    %v337 = vpop.f32.mrb[0].mxu0
    %v338 = vadd.f32 %v73, %v337
    %v339 = vpop.f32.mrb[0].mxu0
    %v340 = vadd.f32 %v77, %v339
    %341 = vmatprep.mubr.f32.mxu0 0.0
    %342 = vmatmul.mubr.f32.gmra.mrb[0].mxu0 %v117
    %v343 = vpop.f32.mrb[0].mxu0
    %v344 = vadd.f32 %v73, %v343
    %v345 = vpop.f32.mrb[0].mxu0
    %v346 = vadd.f32 %v77, %v345
    %347 = vmatprep.mubr.f32.mxu0 0.0
    %348 = vmatmul.mubr.f32.gmra.mrb[0].mxu0 %v120
    %v349 = vpop.f32.mrb[0].mxu0
    %v350 = vadd.f32 %v73, %v349
    %v351 = vpop.f32.mrb[0].mxu0
    %v352 = vadd.f32 %v77, %v351
    %353 = vmatprep.mubr.f32.mxu0 0.0
    %354 = vmatmul.mubr.f32.gmra.mrb[0].mxu0 %v123
    %v355 = vpop.f32.mrb[0].mxu0
    %v356 = vadd.f32 %v73, %v355
    %v357 = vpop.f32.mrb[0].mxu0
    %v358 = vadd.f32 %v77, %v357
    %359 = vdwg.mxu0
    %360 = vst [vmem:[#allocation2] sm:$0xff] %v201
    %361 = vst [vmem:[#allocation2 + $0x8] sm:$0xff] %v203
    %362 = vst [vmem:[#allocation2 + $0x10] sm:$0xff] %v314
    %363 = vst [vmem:[#allocation2 + $0x18] sm:$0xff] %v316
    %364 = vst [vmem:[#allocation2 + $0x20] sm:$0xff] %v207
    %365 = vst [vmem:[#allocation2 + $0x28] sm:$0xff] %v209
    %366 = vst [vmem:[#allocation2 + $0x30] sm:$0xff] %v320
    %367 = vst [vmem:[#allocation2 + $0x38] sm:$0xff] %v322
    %368 = vst [vmem:[#allocation2 + $0x40] sm:$0xff] %v213
    %369 = vst [vmem:[#allocation2 + $0x48] sm:$0xff] %v215
    %370 = vst [vmem:[#allocation2 + $0x50] sm:$0xff] %v326
    %371 = vst [vmem:[#allocation2 + $0x58] sm:$0xff] %v328
    %372 = vst [vmem:[#allocation2 + $0x60] sm:$0xff] %v219
    %373 = vst [vmem:[#allocation2 + $0x68] sm:$0xff] %v221
    %374 = vst [vmem:[#allocation2 + $0x70] sm:$0xff] %v332
    %375 = vst [vmem:[#allocation2 + $0x78] sm:$0xff] %v334
    %376 = vst [vmem:[#allocation2 + $0x80] sm:$0xff] %v225
    %377 = vst [vmem:[#allocation2 + $0x88] sm:$0xff] %v227
    %378 = vst [vmem:[#allocation2 + $0x90] sm:$0xff] %v338
    %379 = vst [vmem:[#allocation2 + $0x98] sm:$0xff] %v340
    %380 = vst [vmem:[#allocation2 + $0xa0] sm:$0xff] %v231
    %381 = vst [vmem:[#allocation2 + $0xa8] sm:$0xff] %v233
    %382 = vst [vmem:[#allocation2 + $0xb0] sm:$0xff] %v344
    %383 = vst [vmem:[#allocation2 + $0xb8] sm:$0xff] %v346
    %384 = vst [vmem:[#allocation2 + $0xc0] sm:$0xff] %v237
    %385 = vst [vmem:[#allocation2 + $0xc8] sm:$0xff] %v239
    %386 = vst [vmem:[#allocation2 + $0xd0] sm:$0xff] %v350
    %387 = vst [vmem:[#allocation2 + $0xd8] sm:$0xff] %v352
    %388 = vst [vmem:[#allocation2 + $0xe0] sm:$0xff] %v243
    %389 = vst [vmem:[#allocation2 + $0xe8] sm:$0xff] %v245
    %390 = vst [vmem:[#allocation2 + $0xf0] sm:$0xff] %v356
    %391 = vst [vmem:[#allocation2 + $0xf8] sm:$0xff] %v358
    %v392 = vld [vmem:[#allocation2] sm:$0xff]
    %v393 = vld [vmem:[#allocation2 + $0x8] sm:$0xff]
    %v394 = vld [vmem:[#allocation2 + $0x10] sm:$0xff]
    %v395 = vld [vmem:[#allocation3] sm:$0xff]
    %v396 = vld [vmem:[#allocation3 + $0x8] sm:$0xff]
    %v397 = vld [vmem:[#allocation3 + $0x10] sm:$0xff]
    %v398 = vld [vmem:[#allocation3 + $0x20] sm:$0xff]
    %v399 = vld [vmem:[#allocation3 + $0x28] sm:$0xff]
    %v400 = vld [vmem:[#allocation3 + $0x30] sm:$0xff]
    %v401 = vld [vmem:[#allocation3 + $0x40] sm:$0xff]
    %v402 = vld [vmem:[#allocation3 + $0x48] sm:$0xff]
    %v403 = vld [vmem:[#allocation3 + $0x50] sm:$0xff]
    %v404 = vld [vmem:[#allocation3 + $0x60] sm:$0xff]
    %v405 = vld [vmem:[#allocation3 + $0x68] sm:$0xff]
    %v406 = vld [vmem:[#allocation3 + $0x70] sm:$0xff]
    %v407 = vld [vmem:[#allocation3 + $0x80] sm:$0xff]
    %v408 = vld [vmem:[#allocation3 + $0x88] sm:$0xff]
    %v409 = vld [vmem:[#allocation3 + $0x90] sm:$0xff]
    %v410 = vld [vmem:[#allocation3 + $0xa0] sm:$0xff]
    %v411 = vld [vmem:[#allocation3 + $0xa8] sm:$0xff]
    %v412 = vld [vmem:[#allocation3 + $0xb0] sm:$0xff]
    %v413 = vld [vmem:[#allocation3 + $0xc0] sm:$0xff]
    %v414 = vld [vmem:[#allocation3 + $0xc8] sm:$0xff]
    %v415 = vld [vmem:[#allocation3 + $0xd0] sm:$0xff]
    %v416 = vld [vmem:[#allocation3 + $0xe0] sm:$0xff]
    %v417 = vld [vmem:[#allocation3 + $0xe8] sm:$0xff]
    %v418 = vld [vmem:[#allocation3 + $0xf0] sm:$0xff]
    %v419 = vld [vmem:[#allocation3 + $0x100] sm:$0xff]
    %v420 = vld [vmem:[#allocation3 + $0x108] sm:$0xff]
    %v421 = vld [vmem:[#allocation3 + $0x110] sm:$0xff]
    %v422 = vld [vmem:[#allocation3 + $0x120] sm:$0xff]
    %v423 = vld [vmem:[#allocation3 + $0x128] sm:$0xff]
    %v424 = vld [vmem:[#allocation3 + $0x130] sm:$0xff]
    %v425 = vld [vmem:[#allocation3 + $0x140] sm:$0xff]
    %v426 = vld [vmem:[#allocation3 + $0x148] sm:$0xff]
    %v427 = vld [vmem:[#allocation3 + $0x150] sm:$0xff]
    %v428 = vld [vmem:[#allocation3 + $0x160] sm:$0xff]
    %v429 = vld [vmem:[#allocation3 + $0x168] sm:$0xff]
    %v430 = vld [vmem:[#allocation3 + $0x170] sm:$0xff]
    %v431 = vld [vmem:[#allocation3 + $0x180] sm:$0xff]
    %v432 = vld [vmem:[#allocation3 + $0x188] sm:$0xff]
    %v433 = vld [vmem:[#allocation3 + $0x190] sm:$0xff]
    %v434 = vld [vmem:[#allocation3 + $0x1a0] sm:$0xff]
    %v435 = vld [vmem:[#allocation3 + $0x1a8] sm:$0xff]
    %v436 = vld [vmem:[#allocation3 + $0x1b0] sm:$0xff]
    %v437 = vld [vmem:[#allocation3 + $0x1c0] sm:$0xff]
    %v438 = vld [vmem:[#allocation3 + $0x1c8] sm:$0xff]
    %v439 = vld [vmem:[#allocation3 + $0x1d0] sm:$0xff]
    %v440 = vld [vmem:[#allocation3 + $0x1e0] sm:$0xff]
    %v441 = vld [vmem:[#allocation3 + $0x1e8] sm:$0xff]
    %v442 = vld [vmem:[#allocation3 + $0x1f0] sm:$0xff]
    %443 = vmatprep.subr.mxu0 %v396
    %444 = vmatpush1.msra.mxu0 %v395
    %445 = vmatprep.subr.mxu0 %v399
    %446 = vmatpush1.msra.mxu0 %v398
    %447 = vmatprep.subr.mxu0 %v402
    %448 = vmatpush1.msra.mxu0 %v401
    %449 = vmatprep.subr.mxu0 %v405
    %450 = vmatpush1.msra.mxu0 %v404
    %451 = vmatprep.subr.mxu0 %v408
    %452 = vmatpush1.msra.mxu0 %v407
    %453 = vmatprep.subr.mxu0 %v411
    %454 = vmatpush1.msra.mxu0 %v410
    %455 = vmatprep.subr.mxu0 %v414
    %456 = vmatpush1.msra.mxu0 %v413
    %457 = vmatprep.subr.mxu0 %v417
    %458 = vmatpush1.msra.mxu0 %v416
    %459 = vmatprep.subr.mxu0 %v420
    %460 = vmatpush1.msra.mxu0 %v419
    %461 = vmatprep.subr.mxu0 %v423
    %462 = vmatpush1.msra.mxu0 %v422
    %463 = vmatprep.subr.mxu0 %v426
    %464 = vmatpush1.msra.mxu0 %v425
    %465 = vmatprep.subr.mxu0 %v429
    %466 = vmatpush1.msra.mxu0 %v428
    %467 = vmatprep.subr.mxu0 %v432
    %468 = vmatpush1.msra.mxu0 %v431
    %469 = vmatprep.subr.mxu0 %v435
    %470 = vmatpush1.msra.mxu0 %v434
    %471 = vmatprep.subr.mxu0 %v438
    %472 = vmatpush1.msra.mxu0 %v437
    %473 = vmatprep.subr.mxu0 %v441
    %474 = vmatpush1.msra.mxu0 %v440
    %475 = vmatprep.subr.mxu0 0.0
    %476 = vmatpush1.msra.mxu0 0.0
    %477 = vmatprep.subr.mxu0 0.0
    %478 = vmatpush1.msra.mxu0 0.0
    %479 = vmatprep.subr.mxu0 0.0
    %480 = vmatpush1.msra.mxu0 0.0
    %481 = vmatprep.subr.mxu0 0.0
    %482 = vmatpush1.msra.mxu0 0.0
    %483 = vmatprep.subr.mxu0 0.0
    %484 = vmatpush1.msra.mxu0 0.0
    %485 = vmatprep.subr.mxu0 0.0
    %486 = vmatpush1.msra.mxu0 0.0
    %487 = vmatprep.subr.mxu0 0.0
    %488 = vmatpush1.msra.mxu0 0.0
    %489 = vmatprep.subr.mxu0 0.0
    %490 = vmatpush1.msra.mxu0 0.0
    %491 = vmatprep.subr.mxu0 0.0
    %492 = vmatpush1.msra.mxu0 0.0
    %493 = vmatprep.subr.mxu0 0.0
    %494 = vmatpush1.msra.mxu0 0.0
    %495 = vmatprep.subr.mxu0 0.0
    %496 = vmatpush1.msra.mxu0 0.0
    %497 = vmatprep.subr.mxu0 0.0
    %498 = vmatpush1.msra.mxu0 0.0
    %499 = vmatprep.subr.mxu0 0.0
    %500 = vmatpush1.msra.mxu0 0.0
    %501 = vmatprep.subr.mxu0 0.0
    %502 = vmatpush1.msra.mxu0 0.0
    %503 = vmatprep.subr.mxu0 0.0
    %504 = vmatpush1.msra.mxu0 0.0
    %505 = vmatprep.subr.mxu0 0.0
    %506 = vmatpush1.msra.mxu0 0.0
    %507 = vmatprep.mubr.f32.mxu0 0.0
    %508 = vmatmul.mubr.f32.gmra.mrb[0].mxu0 0.0
    %v509 = vpop.f32.mrb[0].mxu0
    %v510 = vadd.f32 0.0, %v509
    %v511 = vpop.f32.mrb[0].mxu0
    %v512 = vadd.f32 0.0, %v511
    %513 = vdwg.mxu0
    %514 = vmatprep.subr.mxu0 0.0
    %515 = vmatpush1.msra.mxu0 %v397
    %516 = vmatprep.subr.mxu0 0.0
    %517 = vmatpush1.msra.mxu0 %v400
    %518 = vmatprep.subr.mxu0 0.0
    %519 = vmatpush1.msra.mxu0 %v403
    %520 = vmatprep.subr.mxu0 0.0
    %521 = vmatpush1.msra.mxu0 %v406
    %522 = vmatprep.subr.mxu0 0.0
    %523 = vmatpush1.msra.mxu0 %v409
    %524 = vmatprep.subr.mxu0 0.0
    %525 = vmatpush1.msra.mxu0 %v412
    %526 = vmatprep.subr.mxu0 0.0
    %527 = vmatpush1.msra.mxu0 %v415
    %528 = vmatprep.subr.mxu0 0.0
    %529 = vmatpush1.msra.mxu0 %v418
    %530 = vmatprep.subr.mxu0 0.0
    %531 = vmatpush1.msra.mxu0 %v421
    %532 = vmatprep.subr.mxu0 0.0
    %533 = vmatpush1.msra.mxu0 %v424
    %534 = vmatprep.subr.mxu0 0.0
    %535 = vmatpush1.msra.mxu0 %v427
    %536 = vmatprep.subr.mxu0 0.0
    %537 = vmatpush1.msra.mxu0 %v430
    %538 = vmatprep.subr.mxu0 0.0
    %539 = vmatpush1.msra.mxu0 %v433
    %540 = vmatprep.subr.mxu0 0.0
    %541 = vmatpush1.msra.mxu0 %v436
    %542 = vmatprep.subr.mxu0 0.0
    %543 = vmatpush1.msra.mxu0 %v439
    %544 = vmatprep.subr.mxu0 0.0
    %545 = vmatpush1.msra.mxu0 %v442
    %546 = vmatprep.subr.mxu0 0.0
    %547 = vmatpush1.msra.mxu0 0.0
    %548 = vmatprep.subr.mxu0 0.0
    %549 = vmatpush1.msra.mxu0 0.0
    %550 = vmatprep.subr.mxu0 0.0
    %551 = vmatpush1.msra.mxu0 0.0
    %552 = vmatprep.subr.mxu0 0.0
    %553 = vmatpush1.msra.mxu0 0.0
    %554 = vmatprep.subr.mxu0 0.0
    %555 = vmatpush1.msra.mxu0 0.0
    %556 = vmatprep.subr.mxu0 0.0
    %557 = vmatpush1.msra.mxu0 0.0
    %558 = vmatprep.subr.mxu0 0.0
    %559 = vmatpush1.msra.mxu0 0.0
    %560 = vmatprep.subr.mxu0 0.0
    %561 = vmatpush1.msra.mxu0 0.0
    %562 = vmatprep.subr.mxu0 0.0
    %563 = vmatpush1.msra.mxu0 0.0
    %564 = vmatprep.subr.mxu0 0.0
    %565 = vmatpush1.msra.mxu0 0.0
    %566 = vmatprep.subr.mxu0 0.0
    %567 = vmatpush1.msra.mxu0 0.0
    %568 = vmatprep.subr.mxu0 0.0
    %569 = vmatpush1.msra.mxu0 0.0
    %570 = vmatprep.subr.mxu0 0.0
    %571 = vmatpush1.msra.mxu0 0.0
    %572 = vmatprep.subr.mxu0 0.0
    %573 = vmatpush1.msra.mxu0 0.0
    %574 = vmatprep.subr.mxu0 0.0
    %575 = vmatpush1.msra.mxu0 0.0
    %576 = vmatprep.subr.mxu0 0.0
    %577 = vmatpush1.msra.mxu0 0.0
    %578 = vmatprep.mubr.f32.mxu0 0.0
    %579 = vmatmul.mubr.f32.gmra.mrb[0].mxu0 0.0
    %v580 = vpop.f32.mrb[0].mxu0
    %v581 = vadd.f32 0.0, %v580
    %v582 = vpop.f32.mrb[0].mxu0
    %583 = vdwg.mxu0
    %v584 = vadd.f32 %v392, %v510
    %v585 = vadd.f32 %v393, %v512
    %v586 = vadd.f32 %v394, %v581
    %v587 = vmul.f32 %v584, 0.5
    %v588 = vmul.f32 %v585, 0.5
    %v589 = vmul.f32 %v586, 0.5
    %v590 = vtanh.pop %v587
    %v591 = vtanh.pop %v588
    %v592 = vtanh.pop %v589
    %v593 = vmul.f32 %v590, 0.5
    %v594 = vmul.f32 %v591, 0.5
    %v595 = vmul.f32 %v592, 0.5
    %v596 = vadd.f32 %v593, 0.5
    %v597 = vadd.f32 %v594, 0.5
    %v598 = vadd.f32 %v595, 0.5
    %v599 = vld [vmem:[#allocation2 + $0x18] sm:$0xff]
    %v600 = vld [vmem:[#allocation3 + $0x18] sm:$0xff]
    %v601 = vld [vmem:[#allocation3 + $0x38] sm:$0xff]
    %v602 = vld [vmem:[#allocation3 + $0x58] sm:$0xff]
    %v603 = vld [vmem:[#allocation3 + $0x78] sm:$0xff]
    %v604 = vld [vmem:[#allocation3 + $0x98] sm:$0xff]
    %v605 = vld [vmem:[#allocation3 + $0xb8] sm:$0xff]
    %v606 = vld [vmem:[#allocation3 + $0xd8] sm:$0xff]
    %v607 = vld [vmem:[#allocation3 + $0xf8] sm:$0xff]
    %v608 = vld [vmem:[#allocation3 + $0x118] sm:$0xff]
    %v609 = vld [vmem:[#allocation3 + $0x138] sm:$0xff]
    %v610 = vld [vmem:[#allocation3 + $0x158] sm:$0xff]
    %v611 = vld [vmem:[#allocation3 + $0x178] sm:$0xff]
    %v612 = vld [vmem:[#allocation3 + $0x198] sm:$0xff]
    %v613 = vld [vmem:[#allocation3 + $0x1b8] sm:$0xff]
    %v614 = vld [vmem:[#allocation3 + $0x1d8] sm:$0xff]
    %v615 = vld [vmem:[#allocation3 + $0x1f8] sm:$0xff]
    %616 = vmatprep.subr.mxu0 0.0
    %617 = vmatpush1.msra.mxu0 %v600
    %618 = vmatprep.subr.mxu0 0.0
    %619 = vmatpush1.msra.mxu0 %v601
    %620 = vmatprep.subr.mxu0 0.0
    %621 = vmatpush1.msra.mxu0 %v602
    %622 = vmatprep.subr.mxu0 0.0
    %623 = vmatpush1.msra.mxu0 %v603
    %624 = vmatprep.subr.mxu0 0.0
    %625 = vmatpush1.msra.mxu0 %v604
    %626 = vmatprep.subr.mxu0 0.0
    %627 = vmatpush1.msra.mxu0 %v605
    %628 = vmatprep.subr.mxu0 0.0
    %629 = vmatpush1.msra.mxu0 %v606
    %630 = vmatprep.subr.mxu0 0.0
    %631 = vmatpush1.msra.mxu0 %v607
    %632 = vmatprep.subr.mxu0 0.0
    %633 = vmatpush1.msra.mxu0 %v608
    %634 = vmatprep.subr.mxu0 0.0
    %635 = vmatpush1.msra.mxu0 %v609
    %636 = vmatprep.subr.mxu0 0.0
    %637 = vmatpush1.msra.mxu0 %v610
    %638 = vmatprep.subr.mxu0 0.0
    %639 = vmatpush1.msra.mxu0 %v611
    %640 = vmatprep.subr.mxu0 0.0
    %641 = vmatpush1.msra.mxu0 %v612
    %642 = vmatprep.subr.mxu0 0.0
    %643 = vmatpush1.msra.mxu0 %v613
    %644 = vmatprep.subr.mxu0 0.0
    %645 = vmatpush1.msra.mxu0 %v614
    %646 = vmatprep.subr.mxu0 0.0
    %647 = vmatpush1.msra.mxu0 %v615
    %648 = vmatprep.subr.mxu0 0.0
    %649 = vmatpush1.msra.mxu0 0.0
    %650 = vmatprep.subr.mxu0 0.0
    %651 = vmatpush1.msra.mxu0 0.0
    %652 = vmatprep.subr.mxu0 0.0
    %653 = vmatpush1.msra.mxu0 0.0
    %654 = vmatprep.subr.mxu0 0.0
    %655 = vmatpush1.msra.mxu0 0.0
    %656 = vmatprep.subr.mxu0 0.0
    %657 = vmatpush1.msra.mxu0 0.0
    %658 = vmatprep.subr.mxu0 0.0
    %659 = vmatpush1.msra.mxu0 0.0
    %660 = vmatprep.subr.mxu0 0.0
    %661 = vmatpush1.msra.mxu0 0.0
    %662 = vmatprep.subr.mxu0 0.0
    %663 = vmatpush1.msra.mxu0 0.0
    %664 = vmatprep.subr.mxu0 0.0
    %665 = vmatpush1.msra.mxu0 0.0
    %666 = vmatprep.subr.mxu0 0.0
    %667 = vmatpush1.msra.mxu0 0.0
    %668 = vmatprep.subr.mxu0 0.0
    %669 = vmatpush1.msra.mxu0 0.0
    %670 = vmatprep.subr.mxu0 0.0
    %671 = vmatpush1.msra.mxu0 0.0
    %672 = vmatprep.subr.mxu0 0.0
    %673 = vmatpush1.msra.mxu0 0.0
    %674 = vmatprep.subr.mxu0 0.0
    %675 = vmatpush1.msra.mxu0 0.0
    %676 = vmatprep.subr.mxu0 0.0
    %677 = vmatpush1.msra.mxu0 0.0
    %678 = vmatprep.subr.mxu0 0.0
    %679 = vmatpush1.msra.mxu0 0.0
    %680 = vmatprep.mubr.f32.mxu0 0.0
    %681 = vmatmul.mubr.f32.gmra.mrb[0].mxu0 0.0
    %v682 = vpop.f32.mrb[0].mxu0
    %v683 = vadd.f32 0.0, %v682
    %v684 = vpop.f32.mrb[0].mxu0
    %685 = vdwg.mxu0
    %v686 = vadd.f32 %v599, %v683
    %v687 = vtanh.pop %v686
    %v688 = vmul.f32 %v597, 0.0
    %v689 = vmul.f32 %v596, %v687
    %v690 = vadd.f32 %v688, %v689
    %v691 = vtanh.pop %v690
    %v692 = vmul.f32 %v598, %v691
    %v693 = vld [vmem:[#allocation2 + $0x20] sm:$0xff]
    %v694 = vld [vmem:[#allocation2 + $0x28] sm:$0xff]
    %v695 = vld [vmem:[#allocation2 + $0x30] sm:$0xff]
    %696 = vmatprep.subr.mxu0 %v396
    %697 = vmatpush1.msra.mxu0 %v395
    %698 = vmatprep.subr.mxu0 %v399
    %699 = vmatpush1.msra.mxu0 %v398
    %700 = vmatprep.subr.mxu0 %v402
    %701 = vmatpush1.msra.mxu0 %v401
    %702 = vmatprep.subr.mxu0 %v405
    %703 = vmatpush1.msra.mxu0 %v404
    %704 = vmatprep.subr.mxu0 %v408
    %705 = vmatpush1.msra.mxu0 %v407
    %706 = vmatprep.subr.mxu0 %v411
    %707 = vmatpush1.msra.mxu0 %v410
    %708 = vmatprep.subr.mxu0 %v414
    %709 = vmatpush1.msra.mxu0 %v413
    %710 = vmatprep.subr.mxu0 %v417
    %711 = vmatpush1.msra.mxu0 %v416
    %712 = vmatprep.subr.mxu0 %v420
    %713 = vmatpush1.msra.mxu0 %v419
    %714 = vmatprep.subr.mxu0 %v423
    %715 = vmatpush1.msra.mxu0 %v422
    %716 = vmatprep.subr.mxu0 %v426
    %717 = vmatpush1.msra.mxu0 %v425
    %718 = vmatprep.subr.mxu0 %v429
    %719 = vmatpush1.msra.mxu0 %v428
    %720 = vmatprep.subr.mxu0 %v432
    %721 = vmatpush1.msra.mxu0 %v431
    %722 = vmatprep.subr.mxu0 %v435
    %723 = vmatpush1.msra.mxu0 %v434
    %724 = vmatprep.subr.mxu0 %v438
    %725 = vmatpush1.msra.mxu0 %v437
    %726 = vmatprep.subr.mxu0 %v441
    %727 = vmatpush1.msra.mxu0 %v440
    %728 = vmatprep.subr.mxu0 0.0
    %729 = vmatpush1.msra.mxu0 0.0
    %730 = vmatprep.subr.mxu0 0.0
    %731 = vmatpush1.msra.mxu0 0.0
    %732 = vmatprep.subr.mxu0 0.0
    %733 = vmatpush1.msra.mxu0 0.0
    %734 = vmatprep.subr.mxu0 0.0
    %735 = vmatpush1.msra.mxu0 0.0
    %736 = vmatprep.subr.mxu0 0.0
    %737 = vmatpush1.msra.mxu0 0.0
    %738 = vmatprep.subr.mxu0 0.0
    %739 = vmatpush1.msra.mxu0 0.0
    %740 = vmatprep.subr.mxu0 0.0
    %741 = vmatpush1.msra.mxu0 0.0
    %742 = vmatprep.subr.mxu0 0.0
    %743 = vmatpush1.msra.mxu0 0.0
    %744 = vmatprep.subr.mxu0 0.0
    %745 = vmatpush1.msra.mxu0 0.0
    %746 = vmatprep.subr.mxu0 0.0
    %747 = vmatpush1.msra.mxu0 0.0
    %748 = vmatprep.subr.mxu0 0.0
    %749 = vmatpush1.msra.mxu0 0.0
    %750 = vmatprep.subr.mxu0 0.0
    %751 = vmatpush1.msra.mxu0 0.0
    %752 = vmatprep.subr.mxu0 0.0
    %753 = vmatpush1.msra.mxu0 0.0
    %754 = vmatprep.subr.mxu0 0.0
    %755 = vmatpush1.msra.mxu0 0.0
    %756 = vmatprep.subr.mxu0 0.0
    %757 = vmatpush1.msra.mxu0 0.0
    %758 = vmatprep.subr.mxu0 0.0
    %759 = vmatpush1.msra.mxu0 0.0
    %760 = vmatprep.mubr.f32.mxu0 0.0
    %761 = vmatmul.mubr.f32.gmra.mrb[0].mxu0 %v692
    %v762 = vpop.f32.mrb[0].mxu0
    %v763 = vadd.f32 0.0, %v762
    %v764 = vpop.f32.mrb[0].mxu0
    %v765 = vadd.f32 0.0, %v764
    %766 = vdwg.mxu0
    %767 = vmatprep.subr.mxu0 0.0
    %768 = vmatpush1.msra.mxu0 %v397
    %769 = vmatprep.subr.mxu0 0.0
    %770 = vmatpush1.msra.mxu0 %v400
    %771 = vmatprep.subr.mxu0 0.0
    %772 = vmatpush1.msra.mxu0 %v403
    %773 = vmatprep.subr.mxu0 0.0
    %774 = vmatpush1.msra.mxu0 %v406
    %775 = vmatprep.subr.mxu0 0.0
    %776 = vmatpush1.msra.mxu0 %v409
    %777 = vmatprep.subr.mxu0 0.0
    %778 = vmatpush1.msra.mxu0 %v412
    %779 = vmatprep.subr.mxu0 0.0
    %780 = vmatpush1.msra.mxu0 %v415
    %781 = vmatprep.subr.mxu0 0.0
    %782 = vmatpush1.msra.mxu0 %v418
    %783 = vmatprep.subr.mxu0 0.0
    %784 = vmatpush1.msra.mxu0 %v421
    %785 = vmatprep.subr.mxu0 0.0
    %786 = vmatpush1.msra.mxu0 %v424
    %787 = vmatprep.subr.mxu0 0.0
    %788 = vmatpush1.msra.mxu0 %v427
    %789 = vmatprep.subr.mxu0 0.0
    %790 = vmatpush1.msra.mxu0 %v430
    %791 = vmatprep.subr.mxu0 0.0
    %792 = vmatpush1.msra.mxu0 %v433
    %793 = vmatprep.subr.mxu0 0.0
    %794 = vmatpush1.msra.mxu0 %v436
    %795 = vmatprep.subr.mxu0 0.0
    %796 = vmatpush1.msra.mxu0 %v439
    %797 = vmatprep.subr.mxu0 0.0
    %798 = vmatpush1.msra.mxu0 %v442
    %799 = vmatprep.subr.mxu0 0.0
    %800 = vmatpush1.msra.mxu0 0.0
    %801 = vmatprep.subr.mxu0 0.0
    %802 = vmatpush1.msra.mxu0 0.0
    %803 = vmatprep.subr.mxu0 0.0
    %804 = vmatpush1.msra.mxu0 0.0
    %805 = vmatprep.subr.mxu0 0.0
    %806 = vmatpush1.msra.mxu0 0.0
    %807 = vmatprep.subr.mxu0 0.0
    %808 = vmatpush1.msra.mxu0 0.0
    %809 = vmatprep.subr.mxu0 0.0
    %810 = vmatpush1.msra.mxu0 0.0
    %811 = vmatprep.subr.mxu0 0.0
    %812 = vmatpush1.msra.mxu0 0.0
    %813 = vmatprep.subr.mxu0 0.0
    %814 = vmatpush1.msra.mxu0 0.0
    %815 = vmatprep.subr.mxu0 0.0
    %816 = vmatpush1.msra.mxu0 0.0
    %817 = vmatprep.subr.mxu0 0.0
    %818 = vmatpush1.msra.mxu0 0.0
    %819 = vmatprep.subr.mxu0 0.0
    %820 = vmatpush1.msra.mxu0 0.0
    %821 = vmatprep.subr.mxu0 0.0
    %822 = vmatpush1.msra.mxu0 0.0
    %823 = vmatprep.subr.mxu0 0.0
    %824 = vmatpush1.msra.mxu0 0.0
    %825 = vmatprep.subr.mxu0 0.0
    %826 = vmatpush1.msra.mxu0 0.0
    %827 = vmatprep.subr.mxu0 0.0
    %828 = vmatpush1.msra.mxu0 0.0
    %829 = vmatprep.subr.mxu0 0.0
    %830 = vmatpush1.msra.mxu0 0.0
    %831 = vmatprep.mubr.f32.mxu0 0.0
    %832 = vmatmul.mubr.f32.gmra.mrb[0].mxu0 %v692
    %v833 = vpop.f32.mrb[0].mxu0
    %v834 = vadd.f32 0.0, %v833
    %v835 = vpop.f32.mrb[0].mxu0
    %836 = vdwg.mxu0
    %v837 = vadd.f32 %v693, %v763
    %v838 = vadd.f32 %v694, %v765
    %v839 = vadd.f32 %v695, %v834
    %v840 = vmul.f32 %v837, 0.5
    %v841 = vmul.f32 %v838, 0.5
    %v842 = vmul.f32 %v839, 0.5
    %v843 = vtanh.pop %v840
    %v844 = vtanh.pop %v841
    %v845 = vtanh.pop %v842
    %v846 = vmul.f32 %v843, 0.5
    %v847 = vmul.f32 %v844, 0.5
    %v848 = vmul.f32 %v845, 0.5
    %v849 = vadd.f32 %v846, 0.5
    %v850 = vadd.f32 %v847, 0.5
    %v851 = vadd.f32 %v848, 0.5
    %v852 = vld [vmem:[#allocation2 + $0x38] sm:$0xff]
    %853 = vmatprep.subr.mxu0 0.0
    %854 = vmatpush1.msra.mxu0 %v600
    %855 = vmatprep.subr.mxu0 0.0
    %856 = vmatpush1.msra.mxu0 %v601
    %857 = vmatprep.subr.mxu0 0.0
    %858 = vmatpush1.msra.mxu0 %v602
    %859 = vmatprep.subr.mxu0 0.0
    %860 = vmatpush1.msra.mxu0 %v603
    %861 = vmatprep.subr.mxu0 0.0
    %862 = vmatpush1.msra.mxu0 %v604
    %863 = vmatprep.subr.mxu0 0.0
    %864 = vmatpush1.msra.mxu0 %v605
    %865 = vmatprep.subr.mxu0 0.0
    %866 = vmatpush1.msra.mxu0 %v606
    %867 = vmatprep.subr.mxu0 0.0
    %868 = vmatpush1.msra.mxu0 %v607
    %869 = vmatprep.subr.mxu0 0.0
    %870 = vmatpush1.msra.mxu0 %v608
    %871 = vmatprep.subr.mxu0 0.0
    %872 = vmatpush1.msra.mxu0 %v609
    %873 = vmatprep.subr.mxu0 0.0
    %874 = vmatpush1.msra.mxu0 %v610
    %875 = vmatprep.subr.mxu0 0.0
    %876 = vmatpush1.msra.mxu0 %v611
    %877 = vmatprep.subr.mxu0 0.0
    %878 = vmatpush1.msra.mxu0 %v612
    %879 = vmatprep.subr.mxu0 0.0
    %880 = vmatpush1.msra.mxu0 %v613
    %881 = vmatprep.subr.mxu0 0.0
    %882 = vmatpush1.msra.mxu0 %v614
    %883 = vmatprep.subr.mxu0 0.0
    %884 = vmatpush1.msra.mxu0 %v615
    %885 = vmatprep.subr.mxu0 0.0
    %886 = vmatpush1.msra.mxu0 0.0
    %887 = vmatprep.subr.mxu0 0.0
    %888 = vmatpush1.msra.mxu0 0.0
    %889 = vmatprep.subr.mxu0 0.0
    %890 = vmatpush1.msra.mxu0 0.0
    %891 = vmatprep.subr.mxu0 0.0
    %892 = vmatpush1.msra.mxu0 0.0
    %893 = vmatprep.subr.mxu0 0.0
    %894 = vmatpush1.msra.mxu0 0.0
    %895 = vmatprep.subr.mxu0 0.0
    %896 = vmatpush1.msra.mxu0 0.0
    %897 = vmatprep.subr.mxu0 0.0
    %898 = vmatpush1.msra.mxu0 0.0
    %899 = vmatprep.subr.mxu0 0.0
    %900 = vmatpush1.msra.mxu0 0.0
    %901 = vmatprep.subr.mxu0 0.0
    %902 = vmatpush1.msra.mxu0 0.0
    %903 = vmatprep.subr.mxu0 0.0
    %904 = vmatpush1.msra.mxu0 0.0
    %905 = vmatprep.subr.mxu0 0.0
    %906 = vmatpush1.msra.mxu0 0.0
    %907 = vmatprep.subr.mxu0 0.0
    %908 = vmatpush1.msra.mxu0 0.0
    %909 = vmatprep.subr.mxu0 0.0
    %910 = vmatpush1.msra.mxu0 0.0
    %911 = vmatprep.subr.mxu0 0.0
    %912 = vmatpush1.msra.mxu0 0.0
    %913 = vmatprep.subr.mxu0 0.0
    %914 = vmatpush1.msra.mxu0 0.0
    %915 = vmatprep.subr.mxu0 0.0
    %916 = vmatpush1.msra.mxu0 0.0
    %917 = vmatprep.mubr.f32.mxu0 0.0
    %918 = vmatmul.mubr.f32.gmra.mrb[0].mxu0 %v692
    %v919 = vpop.f32.mrb[0].mxu0
    %v920 = vadd.f32 0.0, %v919
    %v921 = vpop.f32.mrb[0].mxu0
    %922 = vdwg.mxu0
    %v923 = vadd.f32 %v852, %v920
    %v924 = vtanh.pop %v923
    %v925 = vmul.f32 %v850, %v690
    %v926 = vmul.f32 %v849, %v924
    %v927 = vadd.f32 %v925, %v926
    %v928 = vtanh.pop %v927
    %v929 = vmul.f32 %v851, %v928
    %v930 = vld [vmem:[#allocation2 + $0x40] sm:$0xff]
    %v931 = vld [vmem:[#allocation2 + $0x48] sm:$0xff]
    %v932 = vld [vmem:[#allocation2 + $0x50] sm:$0xff]
    %933 = vmatprep.subr.mxu0 %v396
    %934 = vmatpush1.msra.mxu0 %v395
    %935 = vmatprep.subr.mxu0 %v399
    %936 = vmatpush1.msra.mxu0 %v398
    %937 = vmatprep.subr.mxu0 %v402
    %938 = vmatpush1.msra.mxu0 %v401
    %939 = vmatprep.subr.mxu0 %v405
    %940 = vmatpush1.msra.mxu0 %v404
    %941 = vmatprep.subr.mxu0 %v408
    %942 = vmatpush1.msra.mxu0 %v407
    %943 = vmatprep.subr.mxu0 %v411
    %944 = vmatpush1.msra.mxu0 %v410
    %945 = vmatprep.subr.mxu0 %v414
    %946 = vmatpush1.msra.mxu0 %v413
    %947 = vmatprep.subr.mxu0 %v417
    %948 = vmatpush1.msra.mxu0 %v416
    %949 = vmatprep.subr.mxu0 %v420
    %950 = vmatpush1.msra.mxu0 %v419
    %951 = vmatprep.subr.mxu0 %v423
    %952 = vmatpush1.msra.mxu0 %v422
    %953 = vmatprep.subr.mxu0 %v426
    %954 = vmatpush1.msra.mxu0 %v425
    %955 = vmatprep.subr.mxu0 %v429
    %956 = vmatpush1.msra.mxu0 %v428
    %957 = vmatprep.subr.mxu0 %v432
    %958 = vmatpush1.msra.mxu0 %v431
    %959 = vmatprep.subr.mxu0 %v435
    %960 = vmatpush1.msra.mxu0 %v434
    %961 = vmatprep.subr.mxu0 %v438
    %962 = vmatpush1.msra.mxu0 %v437
    %963 = vmatprep.subr.mxu0 %v441
    %964 = vmatpush1.msra.mxu0 %v440
    %965 = vmatprep.subr.mxu0 0.0
    %966 = vmatpush1.msra.mxu0 0.0
    %967 = vmatprep.subr.mxu0 0.0
    %968 = vmatpush1.msra.mxu0 0.0
    %969 = vmatprep.subr.mxu0 0.0
    %970 = vmatpush1.msra.mxu0 0.0
    %971 = vmatprep.subr.mxu0 0.0
    %972 = vmatpush1.msra.mxu0 0.0
    %973 = vmatprep.subr.mxu0 0.0
    %974 = vmatpush1.msra.mxu0 0.0
    %975 = vmatprep.subr.mxu0 0.0
    %976 = vmatpush1.msra.mxu0 0.0
    %977 = vmatprep.subr.mxu0 0.0
    %978 = vmatpush1.msra.mxu0 0.0
    %979 = vmatprep.subr.mxu0 0.0
    %980 = vmatpush1.msra.mxu0 0.0
    %981 = vmatprep.subr.mxu0 0.0
    %982 = vmatpush1.msra.mxu0 0.0
    %983 = vmatprep.subr.mxu0 0.0
    %984 = vmatpush1.msra.mxu0 0.0
    %985 = vmatprep.subr.mxu0 0.0
    %986 = vmatpush1.msra.mxu0 0.0
    %987 = vmatprep.subr.mxu0 0.0
    %988 = vmatpush1.msra.mxu0 0.0
    %989 = vmatprep.subr.mxu0 0.0
    %990 = vmatpush1.msra.mxu0 0.0
    %991 = vmatprep.subr.mxu0 0.0
    %992 = vmatpush1.msra.mxu0 0.0
    %993 = vmatprep.subr.mxu0 0.0
    %994 = vmatpush1.msra.mxu0 0.0
    %995 = vmatprep.subr.mxu0 0.0
    %996 = vmatpush1.msra.mxu0 0.0
    %997 = vmatprep.mubr.f32.mxu0 0.0
    %998 = vmatmul.mubr.f32.gmra.mrb[0].mxu0 %v929
    %v999 = vpop.f32.mrb[0].mxu0
    %v1000 = vadd.f32 0.0, %v999
    %v1001 = vpop.f32.mrb[0].mxu0
    %v1002 = vadd.f32 0.0, %v1001
    %1003 = vdwg.mxu0
    %1004 = vmatprep.subr.mxu0 0.0
    %1005 = vmatpush1.msra.mxu0 %v397
    %1006 = vmatprep.subr.mxu0 0.0
    %1007 = vmatpush1.msra.mxu0 %v400
    %1008 = vmatprep.subr.mxu0 0.0
    %1009 = vmatpush1.msra.mxu0 %v403
    %1010 = vmatprep.subr.mxu0 0.0
    %1011 = vmatpush1.msra.mxu0 %v406
    %1012 = vmatprep.subr.mxu0 0.0
    %1013 = vmatpush1.msra.mxu0 %v409
    %1014 = vmatprep.subr.mxu0 0.0
    %1015 = vmatpush1.msra.mxu0 %v412
    %1016 = vmatprep.subr.mxu0 0.0
    %1017 = vmatpush1.msra.mxu0 %v415
    %1018 = vmatprep.subr.mxu0 0.0
    %1019 = vmatpush1.msra.mxu0 %v418
    %1020 = vmatprep.subr.mxu0 0.0
    %1021 = vmatpush1.msra.mxu0 %v421
    %1022 = vmatprep.subr.mxu0 0.0
    %1023 = vmatpush1.msra.mxu0 %v424
    %1024 = vmatprep.subr.mxu0 0.0
    %1025 = vmatpush1.msra.mxu0 %v427
    %1026 = vmatprep.subr.mxu0 0.0
    %1027 = vmatpush1.msra.mxu0 %v430
    %1028 = vmatprep.subr.mxu0 0.0
    %1029 = vmatpush1.msra.mxu0 %v433
    %1030 = vmatprep.subr.mxu0 0.0
    %1031 = vmatpush1.msra.mxu0 %v436
    %1032 = vmatprep.subr.mxu0 0.0
    %1033 = vmatpush1.msra.mxu0 %v439
    %1034 = vmatprep.subr.mxu0 0.0
    %1035 = vmatpush1.msra.mxu0 %v442
    %1036 = vmatprep.subr.mxu0 0.0
    %1037 = vmatpush1.msra.mxu0 0.0
    %1038 = vmatprep.subr.mxu0 0.0
    %1039 = vmatpush1.msra.mxu0 0.0
    %1040 = vmatprep.subr.mxu0 0.0
    %1041 = vmatpush1.msra.mxu0 0.0
    %1042 = vmatprep.subr.mxu0 0.0
    %1043 = vmatpush1.msra.mxu0 0.0
    %1044 = vmatprep.subr.mxu0 0.0
    %1045 = vmatpush1.msra.mxu0 0.0
    %1046 = vmatprep.subr.mxu0 0.0
    %1047 = vmatpush1.msra.mxu0 0.0
    %1048 = vmatprep.subr.mxu0 0.0
    %1049 = vmatpush1.msra.mxu0 0.0
    %1050 = vmatprep.subr.mxu0 0.0
    %1051 = vmatpush1.msra.mxu0 0.0
    %1052 = vmatprep.subr.mxu0 0.0
    %1053 = vmatpush1.msra.mxu0 0.0
    %1054 = vmatprep.subr.mxu0 0.0
    %1055 = vmatpush1.msra.mxu0 0.0
    %1056 = vmatprep.subr.mxu0 0.0
    %1057 = vmatpush1.msra.mxu0 0.0
    %1058 = vmatprep.subr.mxu0 0.0
    %1059 = vmatpush1.msra.mxu0 0.0
    %1060 = vmatprep.subr.mxu0 0.0
    %1061 = vmatpush1.msra.mxu0 0.0
    %1062 = vmatprep.subr.mxu0 0.0
    %1063 = vmatpush1.msra.mxu0 0.0
    %1064 = vmatprep.subr.mxu0 0.0
    %1065 = vmatpush1.msra.mxu0 0.0
    %1066 = vmatprep.subr.mxu0 0.0
    %1067 = vmatpush1.msra.mxu0 0.0
    %1068 = vmatprep.mubr.f32.mxu0 0.0
    %1069 = vmatmul.mubr.f32.gmra.mrb[0].mxu0 %v929
    %v1070 = vpop.f32.mrb[0].mxu0
    %v1071 = vadd.f32 0.0, %v1070
    %v1072 = vpop.f32.mrb[0].mxu0
    %1073 = vdwg.mxu0
    %v1074 = vadd.f32 %v930, %v1000
    %v1075 = vadd.f32 %v931, %v1002
    %v1076 = vadd.f32 %v932, %v1071
    %v1077 = vmul.f32 %v1074, 0.5
    %v1078 = vmul.f32 %v1075, 0.5
    %v1079 = vmul.f32 %v1076, 0.5
    %v1080 = vtanh.pop %v1077
    %v1081 = vtanh.pop %v1078
    %v1082 = vtanh.pop %v1079
    %v1083 = vmul.f32 %v1080, 0.5
    %v1084 = vmul.f32 %v1081, 0.5
    %v1085 = vmul.f32 %v1082, 0.5
    %v1086 = vadd.f32 %v1083, 0.5
    %v1087 = vadd.f32 %v1084, 0.5
    %v1088 = vadd.f32 %v1085, 0.5
    %v1089 = vld [vmem:[#allocation2 + $0x58] sm:$0xff]
    %1090 = vmatprep.subr.mxu0 0.0
    %1091 = vmatpush1.msra.mxu0 %v600
    %1092 = vmatprep.subr.mxu0 0.0
    %1093 = vmatpush1.msra.mxu0 %v601
    %1094 = vmatprep.subr.mxu0 0.0
    %1095 = vmatpush1.msra.mxu0 %v602
    %1096 = vmatprep.subr.mxu0 0.0
    %1097 = vmatpush1.msra.mxu0 %v603
    %1098 = vmatprep.subr.mxu0 0.0
    %1099 = vmatpush1.msra.mxu0 %v604
    %1100 = vmatprep.subr.mxu0 0.0
    %1101 = vmatpush1.msra.mxu0 %v605
    %1102 = vmatprep.subr.mxu0 0.0
    %1103 = vmatpush1.msra.mxu0 %v606
    %1104 = vmatprep.subr.mxu0 0.0
    %1105 = vmatpush1.msra.mxu0 %v607
    %1106 = vmatprep.subr.mxu0 0.0
    %1107 = vmatpush1.msra.mxu0 %v608
    %1108 = vmatprep.subr.mxu0 0.0
    %1109 = vmatpush1.msra.mxu0 %v609
    %1110 = vmatprep.subr.mxu0 0.0
    %1111 = vmatpush1.msra.mxu0 %v610
    %1112 = vmatprep.subr.mxu0 0.0
    %1113 = vmatpush1.msra.mxu0 %v611
    %1114 = vmatprep.subr.mxu0 0.0
    %1115 = vmatpush1.msra.mxu0 %v612
    %1116 = vmatprep.subr.mxu0 0.0
    %1117 = vmatpush1.msra.mxu0 %v613
    %1118 = vmatprep.subr.mxu0 0.0
    %1119 = vmatpush1.msra.mxu0 %v614
    %1120 = vmatprep.subr.mxu0 0.0
    %1121 = vmatpush1.msra.mxu0 %v615
    %1122 = vmatprep.subr.mxu0 0.0
    %1123 = vmatpush1.msra.mxu0 0.0
    %1124 = vmatprep.subr.mxu0 0.0
    %1125 = vmatpush1.msra.mxu0 0.0
    %1126 = vmatprep.subr.mxu0 0.0
    %1127 = vmatpush1.msra.mxu0 0.0
    %1128 = vmatprep.subr.mxu0 0.0
    %1129 = vmatpush1.msra.mxu0 0.0
    %1130 = vmatprep.subr.mxu0 0.0
    %1131 = vmatpush1.msra.mxu0 0.0
    %1132 = vmatprep.subr.mxu0 0.0
    %1133 = vmatpush1.msra.mxu0 0.0
    %1134 = vmatprep.subr.mxu0 0.0
    %1135 = vmatpush1.msra.mxu0 0.0
    %1136 = vmatprep.subr.mxu0 0.0
    %1137 = vmatpush1.msra.mxu0 0.0
    %1138 = vmatprep.subr.mxu0 0.0
    %1139 = vmatpush1.msra.mxu0 0.0
    %1140 = vmatprep.subr.mxu0 0.0
    %1141 = vmatpush1.msra.mxu0 0.0
    %1142 = vmatprep.subr.mxu0 0.0
    %1143 = vmatpush1.msra.mxu0 0.0
    %1144 = vmatprep.subr.mxu0 0.0
    %1145 = vmatpush1.msra.mxu0 0.0
    %1146 = vmatprep.subr.mxu0 0.0
    %1147 = vmatpush1.msra.mxu0 0.0
    %1148 = vmatprep.subr.mxu0 0.0
    %1149 = vmatpush1.msra.mxu0 0.0
    %1150 = vmatprep.subr.mxu0 0.0
    %1151 = vmatpush1.msra.mxu0 0.0
    %1152 = vmatprep.subr.mxu0 0.0
    %1153 = vmatpush1.msra.mxu0 0.0
    %1154 = vmatprep.mubr.f32.mxu0 0.0
    %1155 = vmatmul.mubr.f32.gmra.mrb[0].mxu0 %v929
    %v1156 = vpop.f32.mrb[0].mxu0
    %v1157 = vadd.f32 0.0, %v1156
    %v1158 = vpop.f32.mrb[0].mxu0
    %1159 = vdwg.mxu0
    %v1160 = vadd.f32 %v1089, %v1157
    %v1161 = vtanh.pop %v1160
    %v1162 = vmul.f32 %v1087, %v927
    %v1163 = vmul.f32 %v1086, %v1161
    %v1164 = vadd.f32 %v1162, %v1163
    %v1165 = vtanh.pop %v1164
    %v1166 = vmul.f32 %v1088, %v1165
    %v1167 = vld [vmem:[#allocation2 + $0x60] sm:$0xff]
    %v1168 = vld [vmem:[#allocation2 + $0x68] sm:$0xff]
    %v1169 = vld [vmem:[#allocation2 + $0x70] sm:$0xff]
    %1170 = vmatprep.subr.mxu0 %v396
    %1171 = vmatpush1.msra.mxu0 %v395
    %1172 = vmatprep.subr.mxu0 %v399
    %1173 = vmatpush1.msra.mxu0 %v398
    %1174 = vmatprep.subr.mxu0 %v402
    %1175 = vmatpush1.msra.mxu0 %v401
    %1176 = vmatprep.subr.mxu0 %v405
    %1177 = vmatpush1.msra.mxu0 %v404
    %1178 = vmatprep.subr.mxu0 %v408
    %1179 = vmatpush1.msra.mxu0 %v407
    %1180 = vmatprep.subr.mxu0 %v411
    %1181 = vmatpush1.msra.mxu0 %v410
    %1182 = vmatprep.subr.mxu0 %v414
    %1183 = vmatpush1.msra.mxu0 %v413
    %1184 = vmatprep.subr.mxu0 %v417
    %1185 = vmatpush1.msra.mxu0 %v416
    %1186 = vmatprep.subr.mxu0 %v420
    %1187 = vmatpush1.msra.mxu0 %v419
    %1188 = vmatprep.subr.mxu0 %v423
    %1189 = vmatpush1.msra.mxu0 %v422
    %1190 = vmatprep.subr.mxu0 %v426
    %1191 = vmatpush1.msra.mxu0 %v425
    %1192 = vmatprep.subr.mxu0 %v429
    %1193 = vmatpush1.msra.mxu0 %v428
    %1194 = vmatprep.subr.mxu0 %v432
    %1195 = vmatpush1.msra.mxu0 %v431
    %1196 = vmatprep.subr.mxu0 %v435
    %1197 = vmatpush1.msra.mxu0 %v434
    %1198 = vmatprep.subr.mxu0 %v438
    %1199 = vmatpush1.msra.mxu0 %v437
    %1200 = vmatprep.subr.mxu0 %v441
    %1201 = vmatpush1.msra.mxu0 %v440
    %1202 = vmatprep.subr.mxu0 0.0
    %1203 = vmatpush1.msra.mxu0 0.0
    %1204 = vmatprep.subr.mxu0 0.0
    %1205 = vmatpush1.msra.mxu0 0.0
    %1206 = vmatprep.subr.mxu0 0.0
    %1207 = vmatpush1.msra.mxu0 0.0
    %1208 = vmatprep.subr.mxu0 0.0
    %1209 = vmatpush1.msra.mxu0 0.0
    %1210 = vmatprep.subr.mxu0 0.0
    %1211 = vmatpush1.msra.mxu0 0.0
    %1212 = vmatprep.subr.mxu0 0.0
    %1213 = vmatpush1.msra.mxu0 0.0
    %1214 = vmatprep.subr.mxu0 0.0
    %1215 = vmatpush1.msra.mxu0 0.0
    %1216 = vmatprep.subr.mxu0 0.0
    %1217 = vmatpush1.msra.mxu0 0.0
    %1218 = vmatprep.subr.mxu0 0.0
    %1219 = vmatpush1.msra.mxu0 0.0
    %1220 = vmatprep.subr.mxu0 0.0
    %1221 = vmatpush1.msra.mxu0 0.0
    %1222 = vmatprep.subr.mxu0 0.0
    %1223 = vmatpush1.msra.mxu0 0.0
    %1224 = vmatprep.subr.mxu0 0.0
    %1225 = vmatpush1.msra.mxu0 0.0
    %1226 = vmatprep.subr.mxu0 0.0
    %1227 = vmatpush1.msra.mxu0 0.0
    %1228 = vmatprep.subr.mxu0 0.0
    %1229 = vmatpush1.msra.mxu0 0.0
    %1230 = vmatprep.subr.mxu0 0.0
    %1231 = vmatpush1.msra.mxu0 0.0
    %1232 = vmatprep.subr.mxu0 0.0
    %1233 = vmatpush1.msra.mxu0 0.0
    %1234 = vmatprep.mubr.f32.mxu0 0.0
    %1235 = vmatmul.mubr.f32.gmra.mrb[0].mxu0 %v1166
    %v1236 = vpop.f32.mrb[0].mxu0
    %v1237 = vadd.f32 0.0, %v1236
    %v1238 = vpop.f32.mrb[0].mxu0
    %v1239 = vadd.f32 0.0, %v1238
    %1240 = vdwg.mxu0
    %1241 = vmatprep.subr.mxu0 0.0
    %1242 = vmatpush1.msra.mxu0 %v397
    %1243 = vmatprep.subr.mxu0 0.0
    %1244 = vmatpush1.msra.mxu0 %v400
    %1245 = vmatprep.subr.mxu0 0.0
    %1246 = vmatpush1.msra.mxu0 %v403
    %1247 = vmatprep.subr.mxu0 0.0
    %1248 = vmatpush1.msra.mxu0 %v406
    %1249 = vmatprep.subr.mxu0 0.0
    %1250 = vmatpush1.msra.mxu0 %v409
    %1251 = vmatprep.subr.mxu0 0.0
    %1252 = vmatpush1.msra.mxu0 %v412
    %1253 = vmatprep.subr.mxu0 0.0
    %1254 = vmatpush1.msra.mxu0 %v415
    %1255 = vmatprep.subr.mxu0 0.0
    %1256 = vmatpush1.msra.mxu0 %v418
    %1257 = vmatprep.subr.mxu0 0.0
    %1258 = vmatpush1.msra.mxu0 %v421
    %1259 = vmatprep.subr.mxu0 0.0
    %1260 = vmatpush1.msra.mxu0 %v424
    %1261 = vmatprep.subr.mxu0 0.0
    %1262 = vmatpush1.msra.mxu0 %v427
    %1263 = vmatprep.subr.mxu0 0.0
    %1264 = vmatpush1.msra.mxu0 %v430
    %1265 = vmatprep.subr.mxu0 0.0
    %1266 = vmatpush1.msra.mxu0 %v433
    %1267 = vmatprep.subr.mxu0 0.0
    %1268 = vmatpush1.msra.mxu0 %v436
    %1269 = vmatprep.subr.mxu0 0.0
    %1270 = vmatpush1.msra.mxu0 %v439
    %1271 = vmatprep.subr.mxu0 0.0
    %1272 = vmatpush1.msra.mxu0 %v442
    %1273 = vmatprep.subr.mxu0 0.0
    %1274 = vmatpush1.msra.mxu0 0.0
    %1275 = vmatprep.subr.mxu0 0.0
    %1276 = vmatpush1.msra.mxu0 0.0
    %1277 = vmatprep.subr.mxu0 0.0
    %1278 = vmatpush1.msra.mxu0 0.0
    %1279 = vmatprep.subr.mxu0 0.0
    %1280 = vmatpush1.msra.mxu0 0.0
    %1281 = vmatprep.subr.mxu0 0.0
    %1282 = vmatpush1.msra.mxu0 0.0
    %1283 = vmatprep.subr.mxu0 0.0
    %1284 = vmatpush1.msra.mxu0 0.0
    %1285 = vmatprep.subr.mxu0 0.0
    %1286 = vmatpush1.msra.mxu0 0.0
    %1287 = vmatprep.subr.mxu0 0.0
    %1288 = vmatpush1.msra.mxu0 0.0
    %1289 = vmatprep.subr.mxu0 0.0
    %1290 = vmatpush1.msra.mxu0 0.0
    %1291 = vmatprep.subr.mxu0 0.0
    %1292 = vmatpush1.msra.mxu0 0.0
    %1293 = vmatprep.subr.mxu0 0.0
    %1294 = vmatpush1.msra.mxu0 0.0
    %1295 = vmatprep.subr.mxu0 0.0
    %1296 = vmatpush1.msra.mxu0 0.0
    %1297 = vmatprep.subr.mxu0 0.0
    %1298 = vmatpush1.msra.mxu0 0.0
    %1299 = vmatprep.subr.mxu0 0.0
    %1300 = vmatpush1.msra.mxu0 0.0
    %1301 = vmatprep.subr.mxu0 0.0
    %1302 = vmatpush1.msra.mxu0 0.0
    %1303 = vmatprep.subr.mxu0 0.0
    %1304 = vmatpush1.msra.mxu0 0.0
    %1305 = vmatprep.mubr.f32.mxu0 0.0
    %1306 = vmatmul.mubr.f32.gmra.mrb[0].mxu0 %v1166
    %v1307 = vpop.f32.mrb[0].mxu0
    %v1308 = vadd.f32 0.0, %v1307
    %v1309 = vpop.f32.mrb[0].mxu0
    %1310 = vdwg.mxu0
    %v1311 = vadd.f32 %v1167, %v1237
    %v1312 = vadd.f32 %v1168, %v1239
    %v1313 = vadd.f32 %v1169, %v1308
    %v1314 = vmul.f32 %v1311, 0.5
    %v1315 = vmul.f32 %v1312, 0.5
    %v1316 = vmul.f32 %v1313, 0.5
    %v1317 = vtanh.pop %v1314
    %v1318 = vtanh.pop %v1315
    %v1319 = vtanh.pop %v1316
    %v1320 = vmul.f32 %v1317, 0.5
    %v1321 = vmul.f32 %v1318, 0.5
    %v1322 = vmul.f32 %v1319, 0.5
    %v1323 = vadd.f32 %v1320, 0.5
    %v1324 = vadd.f32 %v1321, 0.5
    %v1325 = vadd.f32 %v1322, 0.5
    %v1326 = vld [vmem:[#allocation2 + $0x78] sm:$0xff]
    %1327 = vmatprep.subr.mxu0 0.0
    %1328 = vmatpush1.msra.mxu0 %v600
    %1329 = vmatprep.subr.mxu0 0.0
    %1330 = vmatpush1.msra.mxu0 %v601
    %1331 = vmatprep.subr.mxu0 0.0
    %1332 = vmatpush1.msra.mxu0 %v602
    %1333 = vmatprep.subr.mxu0 0.0
    %1334 = vmatpush1.msra.mxu0 %v603
    %1335 = vmatprep.subr.mxu0 0.0
    %1336 = vmatpush1.msra.mxu0 %v604
    %1337 = vmatprep.subr.mxu0 0.0
    %1338 = vmatpush1.msra.mxu0 %v605
    %1339 = vmatprep.subr.mxu0 0.0
    %1340 = vmatpush1.msra.mxu0 %v606
    %1341 = vmatprep.subr.mxu0 0.0
    %1342 = vmatpush1.msra.mxu0 %v607
    %1343 = vmatprep.subr.mxu0 0.0
    %1344 = vmatpush1.msra.mxu0 %v608
    %1345 = vmatprep.subr.mxu0 0.0
    %1346 = vmatpush1.msra.mxu0 %v609
    %1347 = vmatprep.subr.mxu0 0.0
    %1348 = vmatpush1.msra.mxu0 %v610
    %1349 = vmatprep.subr.mxu0 0.0
    %1350 = vmatpush1.msra.mxu0 %v611
    %1351 = vmatprep.subr.mxu0 0.0
    %1352 = vmatpush1.msra.mxu0 %v612
    %1353 = vmatprep.subr.mxu0 0.0
    %1354 = vmatpush1.msra.mxu0 %v613
    %1355 = vmatprep.subr.mxu0 0.0
    %1356 = vmatpush1.msra.mxu0 %v614
    %1357 = vmatprep.subr.mxu0 0.0
    %1358 = vmatpush1.msra.mxu0 %v615
    %1359 = vmatprep.subr.mxu0 0.0
    %1360 = vmatpush1.msra.mxu0 0.0
    %1361 = vmatprep.subr.mxu0 0.0
    %1362 = vmatpush1.msra.mxu0 0.0
    %1363 = vmatprep.subr.mxu0 0.0
    %1364 = vmatpush1.msra.mxu0 0.0
    %1365 = vmatprep.subr.mxu0 0.0
    %1366 = vmatpush1.msra.mxu0 0.0
    %1367 = vmatprep.subr.mxu0 0.0
    %1368 = vmatpush1.msra.mxu0 0.0
    %1369 = vmatprep.subr.mxu0 0.0
    %1370 = vmatpush1.msra.mxu0 0.0
    %1371 = vmatprep.subr.mxu0 0.0
    %1372 = vmatpush1.msra.mxu0 0.0
    %1373 = vmatprep.subr.mxu0 0.0
    %1374 = vmatpush1.msra.mxu0 0.0
    %1375 = vmatprep.subr.mxu0 0.0
    %1376 = vmatpush1.msra.mxu0 0.0
    %1377 = vmatprep.subr.mxu0 0.0
    %1378 = vmatpush1.msra.mxu0 0.0
    %1379 = vmatprep.subr.mxu0 0.0
    %1380 = vmatpush1.msra.mxu0 0.0
    %1381 = vmatprep.subr.mxu0 0.0
    %1382 = vmatpush1.msra.mxu0 0.0
    %1383 = vmatprep.subr.mxu0 0.0
    %1384 = vmatpush1.msra.mxu0 0.0
    %1385 = vmatprep.subr.mxu0 0.0
    %1386 = vmatpush1.msra.mxu0 0.0
    %1387 = vmatprep.subr.mxu0 0.0
    %1388 = vmatpush1.msra.mxu0 0.0
    %1389 = vmatprep.subr.mxu0 0.0
    %1390 = vmatpush1.msra.mxu0 0.0
    %1391 = vmatprep.mubr.f32.mxu0 0.0
    %1392 = vmatmul.mubr.f32.gmra.mrb[0].mxu0 %v1166
    %v1393 = vpop.f32.mrb[0].mxu0
    %v1394 = vadd.f32 0.0, %v1393
    %v1395 = vpop.f32.mrb[0].mxu0
    %1396 = vdwg.mxu0
    %v1397 = vadd.f32 %v1326, %v1394
    %v1398 = vtanh.pop %v1397
    %v1399 = vmul.f32 %v1324, %v1164
    %v1400 = vmul.f32 %v1323, %v1398
    %v1401 = vadd.f32 %v1399, %v1400
    %v1402 = vtanh.pop %v1401
    %v1403 = vmul.f32 %v1325, %v1402
    %v1404 = vld [vmem:[#allocation2 + $0x80] sm:$0xff]
    %v1405 = vld [vmem:[#allocation2 + $0x88] sm:$0xff]
    %v1406 = vld [vmem:[#allocation2 + $0x90] sm:$0xff]
    %1407 = vmatprep.subr.mxu0 %v396
    %1408 = vmatpush1.msra.mxu0 %v395
    %1409 = vmatprep.subr.mxu0 %v399
    %1410 = vmatpush1.msra.mxu0 %v398
    %1411 = vmatprep.subr.mxu0 %v402
    %1412 = vmatpush1.msra.mxu0 %v401
    %1413 = vmatprep.subr.mxu0 %v405
    %1414 = vmatpush1.msra.mxu0 %v404
    %1415 = vmatprep.subr.mxu0 %v408
    %1416 = vmatpush1.msra.mxu0 %v407
    %1417 = vmatprep.subr.mxu0 %v411
    %1418 = vmatpush1.msra.mxu0 %v410
    %1419 = vmatprep.subr.mxu0 %v414
    %1420 = vmatpush1.msra.mxu0 %v413
    %1421 = vmatprep.subr.mxu0 %v417
    %1422 = vmatpush1.msra.mxu0 %v416
    %1423 = vmatprep.subr.mxu0 %v420
    %1424 = vmatpush1.msra.mxu0 %v419
    %1425 = vmatprep.subr.mxu0 %v423
    %1426 = vmatpush1.msra.mxu0 %v422
    %1427 = vmatprep.subr.mxu0 %v426
    %1428 = vmatpush1.msra.mxu0 %v425
    %1429 = vmatprep.subr.mxu0 %v429
    %1430 = vmatpush1.msra.mxu0 %v428
    %1431 = vmatprep.subr.mxu0 %v432
    %1432 = vmatpush1.msra.mxu0 %v431
    %1433 = vmatprep.subr.mxu0 %v435
    %1434 = vmatpush1.msra.mxu0 %v434
    %1435 = vmatprep.subr.mxu0 %v438
    %1436 = vmatpush1.msra.mxu0 %v437
    %1437 = vmatprep.subr.mxu0 %v441
    %1438 = vmatpush1.msra.mxu0 %v440
    %1439 = vmatprep.subr.mxu0 0.0
    %1440 = vmatpush1.msra.mxu0 0.0
    %1441 = vmatprep.subr.mxu0 0.0
    %1442 = vmatpush1.msra.mxu0 0.0
    %1443 = vmatprep.subr.mxu0 0.0
    %1444 = vmatpush1.msra.mxu0 0.0
    %1445 = vmatprep.subr.mxu0 0.0
    %1446 = vmatpush1.msra.mxu0 0.0
    %1447 = vmatprep.subr.mxu0 0.0
    %1448 = vmatpush1.msra.mxu0 0.0
    %1449 = vmatprep.subr.mxu0 0.0
    %1450 = vmatpush1.msra.mxu0 0.0
    %1451 = vmatprep.subr.mxu0 0.0
    %1452 = vmatpush1.msra.mxu0 0.0
    %1453 = vmatprep.subr.mxu0 0.0
    %1454 = vmatpush1.msra.mxu0 0.0
    %1455 = vmatprep.subr.mxu0 0.0
    %1456 = vmatpush1.msra.mxu0 0.0
    %1457 = vmatprep.subr.mxu0 0.0
    %1458 = vmatpush1.msra.mxu0 0.0
    %1459 = vmatprep.subr.mxu0 0.0
    %1460 = vmatpush1.msra.mxu0 0.0
    %1461 = vmatprep.subr.mxu0 0.0
    %1462 = vmatpush1.msra.mxu0 0.0
    %1463 = vmatprep.subr.mxu0 0.0
    %1464 = vmatpush1.msra.mxu0 0.0
    %1465 = vmatprep.subr.mxu0 0.0
    %1466 = vmatpush1.msra.mxu0 0.0
    %1467 = vmatprep.subr.mxu0 0.0
    %1468 = vmatpush1.msra.mxu0 0.0
    %1469 = vmatprep.subr.mxu0 0.0
    %1470 = vmatpush1.msra.mxu0 0.0
    %1471 = vmatprep.mubr.f32.mxu0 0.0
    %1472 = vmatmul.mubr.f32.gmra.mrb[0].mxu0 %v1403
    %v1473 = vpop.f32.mrb[0].mxu0
    %v1474 = vadd.f32 0.0, %v1473
    %v1475 = vpop.f32.mrb[0].mxu0
    %v1476 = vadd.f32 0.0, %v1475
    %1477 = vdwg.mxu0
    %1478 = vmatprep.subr.mxu0 0.0
    %1479 = vmatpush1.msra.mxu0 %v397
    %1480 = vmatprep.subr.mxu0 0.0
    %1481 = vmatpush1.msra.mxu0 %v400
    %1482 = vmatprep.subr.mxu0 0.0
    %1483 = vmatpush1.msra.mxu0 %v403
    %1484 = vmatprep.subr.mxu0 0.0
    %1485 = vmatpush1.msra.mxu0 %v406
    %1486 = vmatprep.subr.mxu0 0.0
    %1487 = vmatpush1.msra.mxu0 %v409
    %1488 = vmatprep.subr.mxu0 0.0
    %1489 = vmatpush1.msra.mxu0 %v412
    %1490 = vmatprep.subr.mxu0 0.0
    %1491 = vmatpush1.msra.mxu0 %v415
    %1492 = vmatprep.subr.mxu0 0.0
    %1493 = vmatpush1.msra.mxu0 %v418
    %1494 = vmatprep.subr.mxu0 0.0
    %1495 = vmatpush1.msra.mxu0 %v421
    %1496 = vmatprep.subr.mxu0 0.0
    %1497 = vmatpush1.msra.mxu0 %v424
    %1498 = vmatprep.subr.mxu0 0.0
    %1499 = vmatpush1.msra.mxu0 %v427
    %1500 = vmatprep.subr.mxu0 0.0
    %1501 = vmatpush1.msra.mxu0 %v430
    %1502 = vmatprep.subr.mxu0 0.0
    %1503 = vmatpush1.msra.mxu0 %v433
    %1504 = vmatprep.subr.mxu0 0.0
    %1505 = vmatpush1.msra.mxu0 %v436
    %1506 = vmatprep.subr.mxu0 0.0
    %1507 = vmatpush1.msra.mxu0 %v439
    %1508 = vmatprep.subr.mxu0 0.0
    %1509 = vmatpush1.msra.mxu0 %v442
    %1510 = vmatprep.subr.mxu0 0.0
    %1511 = vmatpush1.msra.mxu0 0.0
    %1512 = vmatprep.subr.mxu0 0.0
    %1513 = vmatpush1.msra.mxu0 0.0
    %1514 = vmatprep.subr.mxu0 0.0
    %1515 = vmatpush1.msra.mxu0 0.0
    %1516 = vmatprep.subr.mxu0 0.0
    %1517 = vmatpush1.msra.mxu0 0.0
    %1518 = vmatprep.subr.mxu0 0.0
    %1519 = vmatpush1.msra.mxu0 0.0
    %1520 = vmatprep.subr.mxu0 0.0
    %1521 = vmatpush1.msra.mxu0 0.0
    %1522 = vmatprep.subr.mxu0 0.0
    %1523 = vmatpush1.msra.mxu0 0.0
    %1524 = vmatprep.subr.mxu0 0.0
    %1525 = vmatpush1.msra.mxu0 0.0
    %1526 = vmatprep.subr.mxu0 0.0
    %1527 = vmatpush1.msra.mxu0 0.0
    %1528 = vmatprep.subr.mxu0 0.0
    %1529 = vmatpush1.msra.mxu0 0.0
    %1530 = vmatprep.subr.mxu0 0.0
    %1531 = vmatpush1.msra.mxu0 0.0
    %1532 = vmatprep.subr.mxu0 0.0
    %1533 = vmatpush1.msra.mxu0 0.0
    %1534 = vmatprep.subr.mxu0 0.0
    %1535 = vmatpush1.msra.mxu0 0.0
    %1536 = vmatprep.subr.mxu0 0.0
    %1537 = vmatpush1.msra.mxu0 0.0
    %1538 = vmatprep.subr.mxu0 0.0
    %1539 = vmatpush1.msra.mxu0 0.0
    %1540 = vmatprep.subr.mxu0 0.0
    %1541 = vmatpush1.msra.mxu0 0.0
    %1542 = vmatprep.mubr.f32.mxu0 0.0
    %1543 = vmatmul.mubr.f32.gmra.mrb[0].mxu0 %v1403
    %v1544 = vpop.f32.mrb[0].mxu0
    %v1545 = vadd.f32 0.0, %v1544
    %v1546 = vpop.f32.mrb[0].mxu0
    %1547 = vdwg.mxu0
    %v1548 = vadd.f32 %v1404, %v1474
    %v1549 = vadd.f32 %v1405, %v1476
    %v1550 = vadd.f32 %v1406, %v1545
    %v1551 = vmul.f32 %v1548, 0.5
    %v1552 = vmul.f32 %v1549, 0.5
    %v1553 = vmul.f32 %v1550, 0.5
    %v1554 = vtanh.pop %v1551
    %v1555 = vtanh.pop %v1552
    %v1556 = vtanh.pop %v1553
    %v1557 = vmul.f32 %v1554, 0.5
    %v1558 = vmul.f32 %v1555, 0.5
    %v1559 = vmul.f32 %v1556, 0.5
    %v1560 = vadd.f32 %v1557, 0.5
    %v1561 = vadd.f32 %v1558, 0.5
    %v1562 = vadd.f32 %v1559, 0.5
    %v1563 = vld [vmem:[#allocation2 + $0x98] sm:$0xff]
    %1564 = vmatprep.subr.mxu0 0.0
    %1565 = vmatpush1.msra.mxu0 %v600
    %1566 = vmatprep.subr.mxu0 0.0
    %1567 = vmatpush1.msra.mxu0 %v601
    %1568 = vmatprep.subr.mxu0 0.0
    %1569 = vmatpush1.msra.mxu0 %v602
    %1570 = vmatprep.subr.mxu0 0.0
    %1571 = vmatpush1.msra.mxu0 %v603
    %1572 = vmatprep.subr.mxu0 0.0
    %1573 = vmatpush1.msra.mxu0 %v604
    %1574 = vmatprep.subr.mxu0 0.0
    %1575 = vmatpush1.msra.mxu0 %v605
    %1576 = vmatprep.subr.mxu0 0.0
    %1577 = vmatpush1.msra.mxu0 %v606
    %1578 = vmatprep.subr.mxu0 0.0
    %1579 = vmatpush1.msra.mxu0 %v607
    %1580 = vmatprep.subr.mxu0 0.0
    %1581 = vmatpush1.msra.mxu0 %v608
    %1582 = vmatprep.subr.mxu0 0.0
    %1583 = vmatpush1.msra.mxu0 %v609
    %1584 = vmatprep.subr.mxu0 0.0
    %1585 = vmatpush1.msra.mxu0 %v610
    %1586 = vmatprep.subr.mxu0 0.0
    %1587 = vmatpush1.msra.mxu0 %v611
    %1588 = vmatprep.subr.mxu0 0.0
    %1589 = vmatpush1.msra.mxu0 %v612
    %1590 = vmatprep.subr.mxu0 0.0
    %1591 = vmatpush1.msra.mxu0 %v613
    %1592 = vmatprep.subr.mxu0 0.0
    %1593 = vmatpush1.msra.mxu0 %v614
    %1594 = vmatprep.subr.mxu0 0.0
    %1595 = vmatpush1.msra.mxu0 %v615
    %1596 = vmatprep.subr.mxu0 0.0
    %1597 = vmatpush1.msra.mxu0 0.0
    %1598 = vmatprep.subr.mxu0 0.0
    %1599 = vmatpush1.msra.mxu0 0.0
    %1600 = vmatprep.subr.mxu0 0.0
    %1601 = vmatpush1.msra.mxu0 0.0
    %1602 = vmatprep.subr.mxu0 0.0
    %1603 = vmatpush1.msra.mxu0 0.0
    %1604 = vmatprep.subr.mxu0 0.0
    %1605 = vmatpush1.msra.mxu0 0.0
    %1606 = vmatprep.subr.mxu0 0.0
    %1607 = vmatpush1.msra.mxu0 0.0
    %1608 = vmatprep.subr.mxu0 0.0
    %1609 = vmatpush1.msra.mxu0 0.0
    %1610 = vmatprep.subr.mxu0 0.0
    %1611 = vmatpush1.msra.mxu0 0.0
    %1612 = vmatprep.subr.mxu0 0.0
    %1613 = vmatpush1.msra.mxu0 0.0
    %1614 = vmatprep.subr.mxu0 0.0
    %1615 = vmatpush1.msra.mxu0 0.0
    %1616 = vmatprep.subr.mxu0 0.0
    %1617 = vmatpush1.msra.mxu0 0.0
    %1618 = vmatprep.subr.mxu0 0.0
    %1619 = vmatpush1.msra.mxu0 0.0
    %1620 = vmatprep.subr.mxu0 0.0
    %1621 = vmatpush1.msra.mxu0 0.0
    %1622 = vmatprep.subr.mxu0 0.0
    %1623 = vmatpush1.msra.mxu0 0.0
    %1624 = vmatprep.subr.mxu0 0.0
    %1625 = vmatpush1.msra.mxu0 0.0
    %1626 = vmatprep.subr.mxu0 0.0
    %1627 = vmatpush1.msra.mxu0 0.0
    %1628 = vmatprep.mubr.f32.mxu0 0.0
    %1629 = vmatmul.mubr.f32.gmra.mrb[0].mxu0 %v1403
    %v1630 = vpop.f32.mrb[0].mxu0
    %v1631 = vadd.f32 0.0, %v1630
    %v1632 = vpop.f32.mrb[0].mxu0
    %1633 = vdwg.mxu0
    %v1634 = vadd.f32 %v1563, %v1631
    %v1635 = vtanh.pop %v1634
    %v1636 = vmul.f32 %v1561, %v1401
    %v1637 = vmul.f32 %v1560, %v1635
    %v1638 = vadd.f32 %v1636, %v1637
    %v1639 = vtanh.pop %v1638
    %v1640 = vmul.f32 %v1562, %v1639
    %v1641 = vld [vmem:[#allocation2 + $0xa0] sm:$0xff]
    %v1642 = vld [vmem:[#allocation2 + $0xa8] sm:$0xff]
    %v1643 = vld [vmem:[#allocation2 + $0xb0] sm:$0xff]
    %1644 = vmatprep.subr.mxu0 %v396
    %1645 = vmatpush1.msra.mxu0 %v395
    %1646 = vmatprep.subr.mxu0 %v399
    %1647 = vmatpush1.msra.mxu0 %v398
    %1648 = vmatprep.subr.mxu0 %v402
    %1649 = vmatpush1.msra.mxu0 %v401
    %1650 = vmatprep.subr.mxu0 %v405
    %1651 = vmatpush1.msra.mxu0 %v404
    %1652 = vmatprep.subr.mxu0 %v408
    %1653 = vmatpush1.msra.mxu0 %v407
    %1654 = vmatprep.subr.mxu0 %v411
    %1655 = vmatpush1.msra.mxu0 %v410
    %1656 = vmatprep.subr.mxu0 %v414
    %1657 = vmatpush1.msra.mxu0 %v413
    %1658 = vmatprep.subr.mxu0 %v417
    %1659 = vmatpush1.msra.mxu0 %v416
    %1660 = vmatprep.subr.mxu0 %v420
    %1661 = vmatpush1.msra.mxu0 %v419
    %1662 = vmatprep.subr.mxu0 %v423
    %1663 = vmatpush1.msra.mxu0 %v422
    %1664 = vmatprep.subr.mxu0 %v426
    %1665 = vmatpush1.msra.mxu0 %v425
    %1666 = vmatprep.subr.mxu0 %v429
    %1667 = vmatpush1.msra.mxu0 %v428
    %1668 = vmatprep.subr.mxu0 %v432
    %1669 = vmatpush1.msra.mxu0 %v431
    %1670 = vmatprep.subr.mxu0 %v435
    %1671 = vmatpush1.msra.mxu0 %v434
    %1672 = vmatprep.subr.mxu0 %v438
    %1673 = vmatpush1.msra.mxu0 %v437
    %1674 = vmatprep.subr.mxu0 %v441
    %1675 = vmatpush1.msra.mxu0 %v440
    %1676 = vmatprep.subr.mxu0 0.0
    %1677 = vmatpush1.msra.mxu0 0.0
    %1678 = vmatprep.subr.mxu0 0.0
    %1679 = vmatpush1.msra.mxu0 0.0
    %1680 = vmatprep.subr.mxu0 0.0
    %1681 = vmatpush1.msra.mxu0 0.0
    %1682 = vmatprep.subr.mxu0 0.0
    %1683 = vmatpush1.msra.mxu0 0.0
    %1684 = vmatprep.subr.mxu0 0.0
    %1685 = vmatpush1.msra.mxu0 0.0
    %1686 = vmatprep.subr.mxu0 0.0
    %1687 = vmatpush1.msra.mxu0 0.0
    %1688 = vmatprep.subr.mxu0 0.0
    %1689 = vmatpush1.msra.mxu0 0.0
    %1690 = vmatprep.subr.mxu0 0.0
    %1691 = vmatpush1.msra.mxu0 0.0
    %1692 = vmatprep.subr.mxu0 0.0
    %1693 = vmatpush1.msra.mxu0 0.0
    %1694 = vmatprep.subr.mxu0 0.0
    %1695 = vmatpush1.msra.mxu0 0.0
    %1696 = vmatprep.subr.mxu0 0.0
    %1697 = vmatpush1.msra.mxu0 0.0
    %1698 = vmatprep.subr.mxu0 0.0
    %1699 = vmatpush1.msra.mxu0 0.0
    %1700 = vmatprep.subr.mxu0 0.0
    %1701 = vmatpush1.msra.mxu0 0.0
    %1702 = vmatprep.subr.mxu0 0.0
    %1703 = vmatpush1.msra.mxu0 0.0
    %1704 = vmatprep.subr.mxu0 0.0
    %1705 = vmatpush1.msra.mxu0 0.0
    %1706 = vmatprep.subr.mxu0 0.0
    %1707 = vmatpush1.msra.mxu0 0.0
    %1708 = vmatprep.mubr.f32.mxu0 0.0
    %1709 = vmatmul.mubr.f32.gmra.mrb[0].mxu0 %v1640
    %v1710 = vpop.f32.mrb[0].mxu0
    %v1711 = vadd.f32 0.0, %v1710
    %v1712 = vpop.f32.mrb[0].mxu0
    %v1713 = vadd.f32 0.0, %v1712
    %1714 = vdwg.mxu0
    %1715 = vmatprep.subr.mxu0 0.0
    %1716 = vmatpush1.msra.mxu0 %v397
    %1717 = vmatprep.subr.mxu0 0.0
    %1718 = vmatpush1.msra.mxu0 %v400
    %1719 = vmatprep.subr.mxu0 0.0
    %1720 = vmatpush1.msra.mxu0 %v403
    %1721 = vmatprep.subr.mxu0 0.0
    %1722 = vmatpush1.msra.mxu0 %v406
    %1723 = vmatprep.subr.mxu0 0.0
    %1724 = vmatpush1.msra.mxu0 %v409
    %1725 = vmatprep.subr.mxu0 0.0
    %1726 = vmatpush1.msra.mxu0 %v412
    %1727 = vmatprep.subr.mxu0 0.0
    %1728 = vmatpush1.msra.mxu0 %v415
    %1729 = vmatprep.subr.mxu0 0.0
    %1730 = vmatpush1.msra.mxu0 %v418
    %1731 = vmatprep.subr.mxu0 0.0
    %1732 = vmatpush1.msra.mxu0 %v421
    %1733 = vmatprep.subr.mxu0 0.0
    %1734 = vmatpush1.msra.mxu0 %v424
    %1735 = vmatprep.subr.mxu0 0.0
    %1736 = vmatpush1.msra.mxu0 %v427
    %1737 = vmatprep.subr.mxu0 0.0
    %1738 = vmatpush1.msra.mxu0 %v430
    %1739 = vmatprep.subr.mxu0 0.0
    %1740 = vmatpush1.msra.mxu0 %v433
    %1741 = vmatprep.subr.mxu0 0.0
    %1742 = vmatpush1.msra.mxu0 %v436
    %1743 = vmatprep.subr.mxu0 0.0
    %1744 = vmatpush1.msra.mxu0 %v439
    %1745 = vmatprep.subr.mxu0 0.0
    %1746 = vmatpush1.msra.mxu0 %v442
    %1747 = vmatprep.subr.mxu0 0.0
    %1748 = vmatpush1.msra.mxu0 0.0
    %1749 = vmatprep.subr.mxu0 0.0
    %1750 = vmatpush1.msra.mxu0 0.0
    %1751 = vmatprep.subr.mxu0 0.0
    %1752 = vmatpush1.msra.mxu0 0.0
    %1753 = vmatprep.subr.mxu0 0.0
    %1754 = vmatpush1.msra.mxu0 0.0
    %1755 = vmatprep.subr.mxu0 0.0
    %1756 = vmatpush1.msra.mxu0 0.0
    %1757 = vmatprep.subr.mxu0 0.0
    %1758 = vmatpush1.msra.mxu0 0.0
    %1759 = vmatprep.subr.mxu0 0.0
    %1760 = vmatpush1.msra.mxu0 0.0
    %1761 = vmatprep.subr.mxu0 0.0
    %1762 = vmatpush1.msra.mxu0 0.0
    %1763 = vmatprep.subr.mxu0 0.0
    %1764 = vmatpush1.msra.mxu0 0.0
    %1765 = vmatprep.subr.mxu0 0.0
    %1766 = vmatpush1.msra.mxu0 0.0
    %1767 = vmatprep.subr.mxu0 0.0
    %1768 = vmatpush1.msra.mxu0 0.0
    %1769 = vmatprep.subr.mxu0 0.0
    %1770 = vmatpush1.msra.mxu0 0.0
    %1771 = vmatprep.subr.mxu0 0.0
    %1772 = vmatpush1.msra.mxu0 0.0
    %1773 = vmatprep.subr.mxu0 0.0
    %1774 = vmatpush1.msra.mxu0 0.0
    %1775 = vmatprep.subr.mxu0 0.0
    %1776 = vmatpush1.msra.mxu0 0.0
    %1777 = vmatprep.subr.mxu0 0.0
    %1778 = vmatpush1.msra.mxu0 0.0
    %1779 = vmatprep.mubr.f32.mxu0 0.0
    %1780 = vmatmul.mubr.f32.gmra.mrb[0].mxu0 %v1640
    %v1781 = vpop.f32.mrb[0].mxu0
    %v1782 = vadd.f32 0.0, %v1781
    %v1783 = vpop.f32.mrb[0].mxu0
    %1784 = vdwg.mxu0
    %v1785 = vadd.f32 %v1641, %v1711
    %v1786 = vadd.f32 %v1642, %v1713
    %v1787 = vadd.f32 %v1643, %v1782
    %v1788 = vmul.f32 %v1785, 0.5
    %v1789 = vmul.f32 %v1786, 0.5
    %v1790 = vmul.f32 %v1787, 0.5
    %v1791 = vtanh.pop %v1788
    %v1792 = vtanh.pop %v1789
    %v1793 = vtanh.pop %v1790
    %v1794 = vmul.f32 %v1791, 0.5
    %v1795 = vmul.f32 %v1792, 0.5
    %v1796 = vmul.f32 %v1793, 0.5
    %v1797 = vadd.f32 %v1794, 0.5
    %v1798 = vadd.f32 %v1795, 0.5
    %v1799 = vadd.f32 %v1796, 0.5
    %v1800 = vld [vmem:[#allocation2 + $0xb8] sm:$0xff]
    %1801 = vmatprep.subr.mxu0 0.0
    %1802 = vmatpush1.msra.mxu0 %v600
    %1803 = vmatprep.subr.mxu0 0.0
    %1804 = vmatpush1.msra.mxu0 %v601
    %1805 = vmatprep.subr.mxu0 0.0
    %1806 = vmatpush1.msra.mxu0 %v602
    %1807 = vmatprep.subr.mxu0 0.0
    %1808 = vmatpush1.msra.mxu0 %v603
    %1809 = vmatprep.subr.mxu0 0.0
    %1810 = vmatpush1.msra.mxu0 %v604
    %1811 = vmatprep.subr.mxu0 0.0
    %1812 = vmatpush1.msra.mxu0 %v605
    %1813 = vmatprep.subr.mxu0 0.0
    %1814 = vmatpush1.msra.mxu0 %v606
    %1815 = vmatprep.subr.mxu0 0.0
    %1816 = vmatpush1.msra.mxu0 %v607
    %1817 = vmatprep.subr.mxu0 0.0
    %1818 = vmatpush1.msra.mxu0 %v608
    %1819 = vmatprep.subr.mxu0 0.0
    %1820 = vmatpush1.msra.mxu0 %v609
    %1821 = vmatprep.subr.mxu0 0.0
    %1822 = vmatpush1.msra.mxu0 %v610
    %1823 = vmatprep.subr.mxu0 0.0
    %1824 = vmatpush1.msra.mxu0 %v611
    %1825 = vmatprep.subr.mxu0 0.0
    %1826 = vmatpush1.msra.mxu0 %v612
    %1827 = vmatprep.subr.mxu0 0.0
    %1828 = vmatpush1.msra.mxu0 %v613
    %1829 = vmatprep.subr.mxu0 0.0
    %1830 = vmatpush1.msra.mxu0 %v614
    %1831 = vmatprep.subr.mxu0 0.0
    %1832 = vmatpush1.msra.mxu0 %v615
    %1833 = vmatprep.subr.mxu0 0.0
    %1834 = vmatpush1.msra.mxu0 0.0
    %1835 = vmatprep.subr.mxu0 0.0
    %1836 = vmatpush1.msra.mxu0 0.0
    %1837 = vmatprep.subr.mxu0 0.0
    %1838 = vmatpush1.msra.mxu0 0.0
    %1839 = vmatprep.subr.mxu0 0.0
    %1840 = vmatpush1.msra.mxu0 0.0
    %1841 = vmatprep.subr.mxu0 0.0
    %1842 = vmatpush1.msra.mxu0 0.0
    %1843 = vmatprep.subr.mxu0 0.0
    %1844 = vmatpush1.msra.mxu0 0.0
    %1845 = vmatprep.subr.mxu0 0.0
    %1846 = vmatpush1.msra.mxu0 0.0
    %1847 = vmatprep.subr.mxu0 0.0
    %1848 = vmatpush1.msra.mxu0 0.0
    %1849 = vmatprep.subr.mxu0 0.0
    %1850 = vmatpush1.msra.mxu0 0.0
    %1851 = vmatprep.subr.mxu0 0.0
    %1852 = vmatpush1.msra.mxu0 0.0
    %1853 = vmatprep.subr.mxu0 0.0
    %1854 = vmatpush1.msra.mxu0 0.0
    %1855 = vmatprep.subr.mxu0 0.0
    %1856 = vmatpush1.msra.mxu0 0.0
    %1857 = vmatprep.subr.mxu0 0.0
    %1858 = vmatpush1.msra.mxu0 0.0
    %1859 = vmatprep.subr.mxu0 0.0
    %1860 = vmatpush1.msra.mxu0 0.0
    %1861 = vmatprep.subr.mxu0 0.0
    %1862 = vmatpush1.msra.mxu0 0.0
    %1863 = vmatprep.subr.mxu0 0.0
    %1864 = vmatpush1.msra.mxu0 0.0
    %1865 = vmatprep.mubr.f32.mxu0 0.0
    %1866 = vmatmul.mubr.f32.gmra.mrb[0].mxu0 %v1640
    %v1867 = vpop.f32.mrb[0].mxu0
    %v1868 = vadd.f32 0.0, %v1867
    %v1869 = vpop.f32.mrb[0].mxu0
    %1870 = vdwg.mxu0
    %v1871 = vadd.f32 %v1800, %v1868
    %v1872 = vtanh.pop %v1871
    %v1873 = vmul.f32 %v1798, %v1638
    %v1874 = vmul.f32 %v1797, %v1872
    %v1875 = vadd.f32 %v1873, %v1874
    %v1876 = vtanh.pop %v1875
    %v1877 = vmul.f32 %v1799, %v1876
    %v1878 = vld [vmem:[#allocation2 + $0xc0] sm:$0xff]
    %v1879 = vld [vmem:[#allocation2 + $0xc8] sm:$0xff]
    %v1880 = vld [vmem:[#allocation2 + $0xd0] sm:$0xff]
    %1881 = vmatprep.subr.mxu0 %v396
    %1882 = vmatpush1.msra.mxu0 %v395
    %1883 = vmatprep.subr.mxu0 %v399
    %1884 = vmatpush1.msra.mxu0 %v398
    %1885 = vmatprep.subr.mxu0 %v402
    %1886 = vmatpush1.msra.mxu0 %v401
    %1887 = vmatprep.subr.mxu0 %v405
    %1888 = vmatpush1.msra.mxu0 %v404
    %1889 = vmatprep.subr.mxu0 %v408
    %1890 = vmatpush1.msra.mxu0 %v407
    %1891 = vmatprep.subr.mxu0 %v411
    %1892 = vmatpush1.msra.mxu0 %v410
    %1893 = vmatprep.subr.mxu0 %v414
    %1894 = vmatpush1.msra.mxu0 %v413
    %1895 = vmatprep.subr.mxu0 %v417
    %1896 = vmatpush1.msra.mxu0 %v416
    %1897 = vmatprep.subr.mxu0 %v420
    %1898 = vmatpush1.msra.mxu0 %v419
    %1899 = vmatprep.subr.mxu0 %v423
    %1900 = vmatpush1.msra.mxu0 %v422
    %1901 = vmatprep.subr.mxu0 %v426
    %1902 = vmatpush1.msra.mxu0 %v425
    %1903 = vmatprep.subr.mxu0 %v429
    %1904 = vmatpush1.msra.mxu0 %v428
    %1905 = vmatprep.subr.mxu0 %v432
    %1906 = vmatpush1.msra.mxu0 %v431
    %1907 = vmatprep.subr.mxu0 %v435
    %1908 = vmatpush1.msra.mxu0 %v434
    %1909 = vmatprep.subr.mxu0 %v438
    %1910 = vmatpush1.msra.mxu0 %v437
    %1911 = vmatprep.subr.mxu0 %v441
    %1912 = vmatpush1.msra.mxu0 %v440
    %1913 = vmatprep.subr.mxu0 0.0
    %1914 = vmatpush1.msra.mxu0 0.0
    %1915 = vmatprep.subr.mxu0 0.0
    %1916 = vmatpush1.msra.mxu0 0.0
    %1917 = vmatprep.subr.mxu0 0.0
    %1918 = vmatpush1.msra.mxu0 0.0
    %1919 = vmatprep.subr.mxu0 0.0
    %1920 = vmatpush1.msra.mxu0 0.0
    %1921 = vmatprep.subr.mxu0 0.0
    %1922 = vmatpush1.msra.mxu0 0.0
    %1923 = vmatprep.subr.mxu0 0.0
    %1924 = vmatpush1.msra.mxu0 0.0
    %1925 = vmatprep.subr.mxu0 0.0
    %1926 = vmatpush1.msra.mxu0 0.0
    %1927 = vmatprep.subr.mxu0 0.0
    %1928 = vmatpush1.msra.mxu0 0.0
    %1929 = vmatprep.subr.mxu0 0.0
    %1930 = vmatpush1.msra.mxu0 0.0
    %1931 = vmatprep.subr.mxu0 0.0
    %1932 = vmatpush1.msra.mxu0 0.0
    %1933 = vmatprep.subr.mxu0 0.0
    %1934 = vmatpush1.msra.mxu0 0.0
    %1935 = vmatprep.subr.mxu0 0.0
    %1936 = vmatpush1.msra.mxu0 0.0
    %1937 = vmatprep.subr.mxu0 0.0
    %1938 = vmatpush1.msra.mxu0 0.0
    %1939 = vmatprep.subr.mxu0 0.0
    %1940 = vmatpush1.msra.mxu0 0.0
    %1941 = vmatprep.subr.mxu0 0.0
    %1942 = vmatpush1.msra.mxu0 0.0
    %1943 = vmatprep.subr.mxu0 0.0
    %1944 = vmatpush1.msra.mxu0 0.0
    %1945 = vmatprep.mubr.f32.mxu0 0.0
    %1946 = vmatmul.mubr.f32.gmra.mrb[0].mxu0 %v1877
    %v1947 = vpop.f32.mrb[0].mxu0
    %v1948 = vadd.f32 0.0, %v1947
    %v1949 = vpop.f32.mrb[0].mxu0
    %v1950 = vadd.f32 0.0, %v1949
    %1951 = vdwg.mxu0
    %1952 = vmatprep.subr.mxu0 0.0
    %1953 = vmatpush1.msra.mxu0 %v397
    %1954 = vmatprep.subr.mxu0 0.0
    %1955 = vmatpush1.msra.mxu0 %v400
    %1956 = vmatprep.subr.mxu0 0.0
    %1957 = vmatpush1.msra.mxu0 %v403
    %1958 = vmatprep.subr.mxu0 0.0
    %1959 = vmatpush1.msra.mxu0 %v406
    %1960 = vmatprep.subr.mxu0 0.0
    %1961 = vmatpush1.msra.mxu0 %v409
    %1962 = vmatprep.subr.mxu0 0.0
    %1963 = vmatpush1.msra.mxu0 %v412
    %1964 = vmatprep.subr.mxu0 0.0
    %1965 = vmatpush1.msra.mxu0 %v415
    %1966 = vmatprep.subr.mxu0 0.0
    %1967 = vmatpush1.msra.mxu0 %v418
    %1968 = vmatprep.subr.mxu0 0.0
    %1969 = vmatpush1.msra.mxu0 %v421
    %1970 = vmatprep.subr.mxu0 0.0
    %1971 = vmatpush1.msra.mxu0 %v424
    %1972 = vmatprep.subr.mxu0 0.0
    %1973 = vmatpush1.msra.mxu0 %v427
    %1974 = vmatprep.subr.mxu0 0.0
    %1975 = vmatpush1.msra.mxu0 %v430
    %1976 = vmatprep.subr.mxu0 0.0
    %1977 = vmatpush1.msra.mxu0 %v433
    %1978 = vmatprep.subr.mxu0 0.0
    %1979 = vmatpush1.msra.mxu0 %v436
    %1980 = vmatprep.subr.mxu0 0.0
    %1981 = vmatpush1.msra.mxu0 %v439
    %1982 = vmatprep.subr.mxu0 0.0
    %1983 = vmatpush1.msra.mxu0 %v442
    %1984 = vmatprep.subr.mxu0 0.0
    %1985 = vmatpush1.msra.mxu0 0.0
    %1986 = vmatprep.subr.mxu0 0.0
    %1987 = vmatpush1.msra.mxu0 0.0
    %1988 = vmatprep.subr.mxu0 0.0
    %1989 = vmatpush1.msra.mxu0 0.0
    %1990 = vmatprep.subr.mxu0 0.0
    %1991 = vmatpush1.msra.mxu0 0.0
    %1992 = vmatprep.subr.mxu0 0.0
    %1993 = vmatpush1.msra.mxu0 0.0
    %1994 = vmatprep.subr.mxu0 0.0
    %1995 = vmatpush1.msra.mxu0 0.0
    %1996 = vmatprep.subr.mxu0 0.0
    %1997 = vmatpush1.msra.mxu0 0.0
    %1998 = vmatprep.subr.mxu0 0.0
    %1999 = vmatpush1.msra.mxu0 0.0
    %2000 = vmatprep.subr.mxu0 0.0
    %2001 = vmatpush1.msra.mxu0 0.0
    %2002 = vmatprep.subr.mxu0 0.0
    %2003 = vmatpush1.msra.mxu0 0.0
    %2004 = vmatprep.subr.mxu0 0.0
    %2005 = vmatpush1.msra.mxu0 0.0
    %2006 = vmatprep.subr.mxu0 0.0
    %2007 = vmatpush1.msra.mxu0 0.0
    %2008 = vmatprep.subr.mxu0 0.0
    %2009 = vmatpush1.msra.mxu0 0.0
    %2010 = vmatprep.subr.mxu0 0.0
    %2011 = vmatpush1.msra.mxu0 0.0
    %2012 = vmatprep.subr.mxu0 0.0
    %2013 = vmatpush1.msra.mxu0 0.0
    %2014 = vmatprep.subr.mxu0 0.0
    %2015 = vmatpush1.msra.mxu0 0.0
    %2016 = vmatprep.mubr.f32.mxu0 0.0
    %2017 = vmatmul.mubr.f32.gmra.mrb[0].mxu0 %v1877
    %v2018 = vpop.f32.mrb[0].mxu0
    %v2019 = vadd.f32 0.0, %v2018
    %v2020 = vpop.f32.mrb[0].mxu0
    %2021 = vdwg.mxu0
    %v2022 = vadd.f32 %v1878, %v1948
    %v2023 = vadd.f32 %v1879, %v1950
    %v2024 = vadd.f32 %v1880, %v2019
    %v2025 = vmul.f32 %v2022, 0.5
    %v2026 = vmul.f32 %v2023, 0.5
    %v2027 = vmul.f32 %v2024, 0.5
    %v2028 = vtanh.pop %v2025
    %v2029 = vtanh.pop %v2026
    %v2030 = vtanh.pop %v2027
    %v2031 = vmul.f32 %v2028, 0.5
    %v2032 = vmul.f32 %v2029, 0.5
    %v2033 = vmul.f32 %v2030, 0.5
    %v2034 = vadd.f32 %v2031, 0.5
    %v2035 = vadd.f32 %v2032, 0.5
    %v2036 = vadd.f32 %v2033, 0.5
    %v2037 = vld [vmem:[#allocation2 + $0xd8] sm:$0xff]
    %2038 = vmatprep.subr.mxu0 0.0
    %2039 = vmatpush1.msra.mxu0 %v600
    %2040 = vmatprep.subr.mxu0 0.0
    %2041 = vmatpush1.msra.mxu0 %v601
    %2042 = vmatprep.subr.mxu0 0.0
    %2043 = vmatpush1.msra.mxu0 %v602
    %2044 = vmatprep.subr.mxu0 0.0
    %2045 = vmatpush1.msra.mxu0 %v603
    %2046 = vmatprep.subr.mxu0 0.0
    %2047 = vmatpush1.msra.mxu0 %v604
    %2048 = vmatprep.subr.mxu0 0.0
    %2049 = vmatpush1.msra.mxu0 %v605
    %2050 = vmatprep.subr.mxu0 0.0
    %2051 = vmatpush1.msra.mxu0 %v606
    %2052 = vmatprep.subr.mxu0 0.0
    %2053 = vmatpush1.msra.mxu0 %v607
    %2054 = vmatprep.subr.mxu0 0.0
    %2055 = vmatpush1.msra.mxu0 %v608
    %2056 = vmatprep.subr.mxu0 0.0
    %2057 = vmatpush1.msra.mxu0 %v609
    %2058 = vmatprep.subr.mxu0 0.0
    %2059 = vmatpush1.msra.mxu0 %v610
    %2060 = vmatprep.subr.mxu0 0.0
    %2061 = vmatpush1.msra.mxu0 %v611
    %2062 = vmatprep.subr.mxu0 0.0
    %2063 = vmatpush1.msra.mxu0 %v612
    %2064 = vmatprep.subr.mxu0 0.0
    %2065 = vmatpush1.msra.mxu0 %v613
    %2066 = vmatprep.subr.mxu0 0.0
    %2067 = vmatpush1.msra.mxu0 %v614
    %2068 = vmatprep.subr.mxu0 0.0
    %2069 = vmatpush1.msra.mxu0 %v615
    %2070 = vmatprep.subr.mxu0 0.0
    %2071 = vmatpush1.msra.mxu0 0.0
    %2072 = vmatprep.subr.mxu0 0.0
    %2073 = vmatpush1.msra.mxu0 0.0
    %2074 = vmatprep.subr.mxu0 0.0
    %2075 = vmatpush1.msra.mxu0 0.0
    %2076 = vmatprep.subr.mxu0 0.0
    %2077 = vmatpush1.msra.mxu0 0.0
    %2078 = vmatprep.subr.mxu0 0.0
    %2079 = vmatpush1.msra.mxu0 0.0
    %2080 = vmatprep.subr.mxu0 0.0
    %2081 = vmatpush1.msra.mxu0 0.0
    %2082 = vmatprep.subr.mxu0 0.0
    %2083 = vmatpush1.msra.mxu0 0.0
    %2084 = vmatprep.subr.mxu0 0.0
    %2085 = vmatpush1.msra.mxu0 0.0
    %2086 = vmatprep.subr.mxu0 0.0
    %2087 = vmatpush1.msra.mxu0 0.0
    %2088 = vmatprep.subr.mxu0 0.0
    %2089 = vmatpush1.msra.mxu0 0.0
    %2090 = vmatprep.subr.mxu0 0.0
    %2091 = vmatpush1.msra.mxu0 0.0
    %2092 = vmatprep.subr.mxu0 0.0
    %2093 = vmatpush1.msra.mxu0 0.0
    %2094 = vmatprep.subr.mxu0 0.0
    %2095 = vmatpush1.msra.mxu0 0.0
    %2096 = vmatprep.subr.mxu0 0.0
    %2097 = vmatpush1.msra.mxu0 0.0
    %2098 = vmatprep.subr.mxu0 0.0
    %2099 = vmatpush1.msra.mxu0 0.0
    %2100 = vmatprep.subr.mxu0 0.0
    %2101 = vmatpush1.msra.mxu0 0.0
    %2102 = vmatprep.mubr.f32.mxu0 0.0
    %2103 = vmatmul.mubr.f32.gmra.mrb[0].mxu0 %v1877
    %v2104 = vpop.f32.mrb[0].mxu0
    %v2105 = vadd.f32 0.0, %v2104
    %v2106 = vpop.f32.mrb[0].mxu0
    %2107 = vdwg.mxu0
    %v2108 = vadd.f32 %v2037, %v2105
    %v2109 = vtanh.pop %v2108
    %v2110 = vmul.f32 %v2035, %v1875
    %v2111 = vmul.f32 %v2034, %v2109
    %v2112 = vadd.f32 %v2110, %v2111
    %v2113 = vtanh.pop %v2112
    %v2114 = vmul.f32 %v2036, %v2113
    %v2115 = vld [vmem:[#allocation2 + $0xe0] sm:$0xff]
    %v2116 = vld [vmem:[#allocation2 + $0xe8] sm:$0xff]
    %v2117 = vld [vmem:[#allocation2 + $0xf0] sm:$0xff]
    %2118 = vmatprep.subr.mxu0 %v396
    %2119 = vmatpush1.msra.mxu0 %v395
    %2120 = vmatprep.subr.mxu0 %v399
    %2121 = vmatpush1.msra.mxu0 %v398
    %2122 = vmatprep.subr.mxu0 %v402
    %2123 = vmatpush1.msra.mxu0 %v401
    %2124 = vmatprep.subr.mxu0 %v405
    %2125 = vmatpush1.msra.mxu0 %v404
    %2126 = vmatprep.subr.mxu0 %v408
    %2127 = vmatpush1.msra.mxu0 %v407
    %2128 = vmatprep.subr.mxu0 %v411
    %2129 = vmatpush1.msra.mxu0 %v410
    %2130 = vmatprep.subr.mxu0 %v414
    %2131 = vmatpush1.msra.mxu0 %v413
    %2132 = vmatprep.subr.mxu0 %v417
    %2133 = vmatpush1.msra.mxu0 %v416
    %2134 = vmatprep.subr.mxu0 %v420
    %2135 = vmatpush1.msra.mxu0 %v419
    %2136 = vmatprep.subr.mxu0 %v423
    %2137 = vmatpush1.msra.mxu0 %v422
    %2138 = vmatprep.subr.mxu0 %v426
    %2139 = vmatpush1.msra.mxu0 %v425
    %2140 = vmatprep.subr.mxu0 %v429
    %2141 = vmatpush1.msra.mxu0 %v428
    %2142 = vmatprep.subr.mxu0 %v432
    %2143 = vmatpush1.msra.mxu0 %v431
    %2144 = vmatprep.subr.mxu0 %v435
    %2145 = vmatpush1.msra.mxu0 %v434
    %2146 = vmatprep.subr.mxu0 %v438
    %2147 = vmatpush1.msra.mxu0 %v437
    %2148 = vmatprep.subr.mxu0 %v441
    %2149 = vmatpush1.msra.mxu0 %v440
    %2150 = vmatprep.subr.mxu0 0.0
    %2151 = vmatpush1.msra.mxu0 0.0
    %2152 = vmatprep.subr.mxu0 0.0
    %2153 = vmatpush1.msra.mxu0 0.0
    %2154 = vmatprep.subr.mxu0 0.0
    %2155 = vmatpush1.msra.mxu0 0.0
    %2156 = vmatprep.subr.mxu0 0.0
    %2157 = vmatpush1.msra.mxu0 0.0
    %2158 = vmatprep.subr.mxu0 0.0
    %2159 = vmatpush1.msra.mxu0 0.0
    %2160 = vmatprep.subr.mxu0 0.0
    %2161 = vmatpush1.msra.mxu0 0.0
    %2162 = vmatprep.subr.mxu0 0.0
    %2163 = vmatpush1.msra.mxu0 0.0
    %2164 = vmatprep.subr.mxu0 0.0
    %2165 = vmatpush1.msra.mxu0 0.0
    %2166 = vmatprep.subr.mxu0 0.0
    %2167 = vmatpush1.msra.mxu0 0.0
    %2168 = vmatprep.subr.mxu0 0.0
    %2169 = vmatpush1.msra.mxu0 0.0
    %2170 = vmatprep.subr.mxu0 0.0
    %2171 = vmatpush1.msra.mxu0 0.0
    %2172 = vmatprep.subr.mxu0 0.0
    %2173 = vmatpush1.msra.mxu0 0.0
    %2174 = vmatprep.subr.mxu0 0.0
    %2175 = vmatpush1.msra.mxu0 0.0
    %2176 = vmatprep.subr.mxu0 0.0
    %2177 = vmatpush1.msra.mxu0 0.0
    %2178 = vmatprep.subr.mxu0 0.0
    %2179 = vmatpush1.msra.mxu0 0.0
    %2180 = vmatprep.subr.mxu0 0.0
    %2181 = vmatpush1.msra.mxu0 0.0
    %2182 = vmatprep.mubr.f32.mxu0 0.0
    %2183 = vmatmul.mubr.f32.gmra.mrb[0].mxu0 %v2114
    %v2184 = vpop.f32.mrb[0].mxu0
    %v2185 = vadd.f32 0.0, %v2184
    %v2186 = vpop.f32.mrb[0].mxu0
    %v2187 = vadd.f32 0.0, %v2186
    %2188 = vdwg.mxu0
    %2189 = vmatprep.subr.mxu0 0.0
    %2190 = vmatpush1.msra.mxu0 %v397
    %2191 = vmatprep.subr.mxu0 0.0
    %2192 = vmatpush1.msra.mxu0 %v400
    %2193 = vmatprep.subr.mxu0 0.0
    %2194 = vmatpush1.msra.mxu0 %v403
    %2195 = vmatprep.subr.mxu0 0.0
    %2196 = vmatpush1.msra.mxu0 %v406
    %2197 = vmatprep.subr.mxu0 0.0
    %2198 = vmatpush1.msra.mxu0 %v409
    %2199 = vmatprep.subr.mxu0 0.0
    %2200 = vmatpush1.msra.mxu0 %v412
    %2201 = vmatprep.subr.mxu0 0.0
    %2202 = vmatpush1.msra.mxu0 %v415
    %2203 = vmatprep.subr.mxu0 0.0
    %2204 = vmatpush1.msra.mxu0 %v418
    %2205 = vmatprep.subr.mxu0 0.0
    %2206 = vmatpush1.msra.mxu0 %v421
    %2207 = vmatprep.subr.mxu0 0.0
    %2208 = vmatpush1.msra.mxu0 %v424
    %2209 = vmatprep.subr.mxu0 0.0
    %2210 = vmatpush1.msra.mxu0 %v427
    %2211 = vmatprep.subr.mxu0 0.0
    %2212 = vmatpush1.msra.mxu0 %v430
    %2213 = vmatprep.subr.mxu0 0.0
    %2214 = vmatpush1.msra.mxu0 %v433
    %2215 = vmatprep.subr.mxu0 0.0
    %2216 = vmatpush1.msra.mxu0 %v436
    %2217 = vmatprep.subr.mxu0 0.0
    %2218 = vmatpush1.msra.mxu0 %v439
    %2219 = vmatprep.subr.mxu0 0.0
    %2220 = vmatpush1.msra.mxu0 %v442
    %2221 = vmatprep.subr.mxu0 0.0
    %2222 = vmatpush1.msra.mxu0 0.0
    %2223 = vmatprep.subr.mxu0 0.0
    %2224 = vmatpush1.msra.mxu0 0.0
    %2225 = vmatprep.subr.mxu0 0.0
    %2226 = vmatpush1.msra.mxu0 0.0
    %2227 = vmatprep.subr.mxu0 0.0
    %2228 = vmatpush1.msra.mxu0 0.0
    %2229 = vmatprep.subr.mxu0 0.0
    %2230 = vmatpush1.msra.mxu0 0.0
    %2231 = vmatprep.subr.mxu0 0.0
    %2232 = vmatpush1.msra.mxu0 0.0
    %2233 = vmatprep.subr.mxu0 0.0
    %2234 = vmatpush1.msra.mxu0 0.0
    %2235 = vmatprep.subr.mxu0 0.0
    %2236 = vmatpush1.msra.mxu0 0.0
    %2237 = vmatprep.subr.mxu0 0.0
    %2238 = vmatpush1.msra.mxu0 0.0
    %2239 = vmatprep.subr.mxu0 0.0
    %2240 = vmatpush1.msra.mxu0 0.0
    %2241 = vmatprep.subr.mxu0 0.0
    %2242 = vmatpush1.msra.mxu0 0.0
    %2243 = vmatprep.subr.mxu0 0.0
    %2244 = vmatpush1.msra.mxu0 0.0
    %2245 = vmatprep.subr.mxu0 0.0
    %2246 = vmatpush1.msra.mxu0 0.0
    %2247 = vmatprep.subr.mxu0 0.0
    %2248 = vmatpush1.msra.mxu0 0.0
    %2249 = vmatprep.subr.mxu0 0.0
    %2250 = vmatpush1.msra.mxu0 0.0
    %2251 = vmatprep.subr.mxu0 0.0
    %2252 = vmatpush1.msra.mxu0 0.0
    %2253 = vmatprep.mubr.f32.mxu0 0.0
    %2254 = vmatmul.mubr.f32.gmra.mrb[0].mxu0 %v2114
    %v2255 = vpop.f32.mrb[0].mxu0
    %v2256 = vadd.f32 0.0, %v2255
    %v2257 = vpop.f32.mrb[0].mxu0
    %2258 = vdwg.mxu0
    %v2259 = vadd.f32 %v2115, %v2185
    %v2260 = vadd.f32 %v2116, %v2187
    %v2261 = vadd.f32 %v2117, %v2256
    %v2262 = vmul.f32 %v2259, 0.5
    %v2263 = vmul.f32 %v2260, 0.5
    %v2264 = vmul.f32 %v2261, 0.5
    %v2265 = vtanh.pop %v2262
    %v2266 = vtanh.pop %v2263
    %v2267 = vtanh.pop %v2264
    %v2268 = vmul.f32 %v2265, 0.5
    %v2269 = vmul.f32 %v2266, 0.5
    %v2270 = vmul.f32 %v2267, 0.5
    %v2271 = vadd.f32 %v2268, 0.5
    %v2272 = vadd.f32 %v2269, 0.5
    %v2273 = vadd.f32 %v2270, 0.5
    %v2274 = vld [vmem:[#allocation2 + $0xf8] sm:$0xff]
    %2275 = vmatprep.subr.mxu0 0.0
    %2276 = vmatpush1.msra.mxu0 %v600
    %2277 = vmatprep.subr.mxu0 0.0
    %2278 = vmatpush1.msra.mxu0 %v601
    %2279 = vmatprep.subr.mxu0 0.0
    %2280 = vmatpush1.msra.mxu0 %v602
    %2281 = vmatprep.subr.mxu0 0.0
    %2282 = vmatpush1.msra.mxu0 %v603
    %2283 = vmatprep.subr.mxu0 0.0
    %2284 = vmatpush1.msra.mxu0 %v604
    %2285 = vmatprep.subr.mxu0 0.0
    %2286 = vmatpush1.msra.mxu0 %v605
    %2287 = vmatprep.subr.mxu0 0.0
    %2288 = vmatpush1.msra.mxu0 %v606
    %2289 = vmatprep.subr.mxu0 0.0
    %2290 = vmatpush1.msra.mxu0 %v607
    %2291 = vmatprep.subr.mxu0 0.0
    %2292 = vmatpush1.msra.mxu0 %v608
    %2293 = vmatprep.subr.mxu0 0.0
    %2294 = vmatpush1.msra.mxu0 %v609
    %2295 = vmatprep.subr.mxu0 0.0
    %2296 = vmatpush1.msra.mxu0 %v610
    %2297 = vmatprep.subr.mxu0 0.0
    %2298 = vmatpush1.msra.mxu0 %v611
    %2299 = vmatprep.subr.mxu0 0.0
    %2300 = vmatpush1.msra.mxu0 %v612
    %2301 = vmatprep.subr.mxu0 0.0
    %2302 = vmatpush1.msra.mxu0 %v613
    %2303 = vmatprep.subr.mxu0 0.0
    %2304 = vmatpush1.msra.mxu0 %v614
    %2305 = vmatprep.subr.mxu0 0.0
    %2306 = vmatpush1.msra.mxu0 %v615
    %2307 = vmatprep.subr.mxu0 0.0
    %2308 = vmatpush1.msra.mxu0 0.0
    %2309 = vmatprep.subr.mxu0 0.0
    %2310 = vmatpush1.msra.mxu0 0.0
    %2311 = vmatprep.subr.mxu0 0.0
    %2312 = vmatpush1.msra.mxu0 0.0
    %2313 = vmatprep.subr.mxu0 0.0
    %2314 = vmatpush1.msra.mxu0 0.0
    %2315 = vmatprep.subr.mxu0 0.0
    %2316 = vmatpush1.msra.mxu0 0.0
    %2317 = vmatprep.subr.mxu0 0.0
    %2318 = vmatpush1.msra.mxu0 0.0
    %2319 = vmatprep.subr.mxu0 0.0
    %2320 = vmatpush1.msra.mxu0 0.0
    %2321 = vmatprep.subr.mxu0 0.0
    %2322 = vmatpush1.msra.mxu0 0.0
    %2323 = vmatprep.subr.mxu0 0.0
    %2324 = vmatpush1.msra.mxu0 0.0
    %2325 = vmatprep.subr.mxu0 0.0
    %2326 = vmatpush1.msra.mxu0 0.0
    %2327 = vmatprep.subr.mxu0 0.0
    %2328 = vmatpush1.msra.mxu0 0.0
    %2329 = vmatprep.subr.mxu0 0.0
    %2330 = vmatpush1.msra.mxu0 0.0
    %2331 = vmatprep.subr.mxu0 0.0
    %2332 = vmatpush1.msra.mxu0 0.0
    %2333 = vmatprep.subr.mxu0 0.0
    %2334 = vmatpush1.msra.mxu0 0.0
    %2335 = vmatprep.subr.mxu0 0.0
    %2336 = vmatpush1.msra.mxu0 0.0
    %2337 = vmatprep.subr.mxu0 0.0
    %2338 = vmatpush1.msra.mxu0 0.0
    %2339 = vmatprep.mubr.f32.mxu0 0.0
    %2340 = vmatmul.mubr.f32.gmra.mrb[0].mxu0 %v2114
    %v2341 = vpop.f32.mrb[0].mxu0
    %v2342 = vadd.f32 0.0, %v2341
    %v2343 = vpop.f32.mrb[0].mxu0
    %2344 = vdwg.mxu0
    %v2345 = vadd.f32 %v2274, %v2342
    %v2346 = vtanh.pop %v2345
    %v2347 = vmul.f32 %v2272, %v2112
    %v2348 = vmul.f32 %v2271, %v2346
    %v2349 = vadd.f32 %v2347, %v2348
    %v2350 = vtanh.pop %v2349
    %v2351 = vmul.f32 %v2273, %v2350
    %v2352 = vld [vmem:[#allocation5] sm:$0xff]
    %v2353 = vld [vmem:[#allocation5 + $0x8] sm:$0xff]
    %v2354 = vld [vmem:[#allocation5 + $0x10] sm:$0xff]
    %v2355 = vld [vmem:[#allocation5 + $0x18] sm:$0xff]
    %v2356 = vld [vmem:[#allocation5 + $0x20] sm:$0xff]
    %v2357 = vld [vmem:[#allocation5 + $0x28] sm:$0xff]
    %v2358 = vld [vmem:[#allocation5 + $0x30] sm:$0xff]
    %v2359 = vld [vmem:[#allocation5 + $0x38] sm:$0xff]
    %v2360 = vld [vmem:[#allocation5 + $0x40] sm:$0xff]
    %v2361 = vld [vmem:[#allocation5 + $0x48] sm:$0xff]
    %v2362 = vld [vmem:[#allocation5 + $0x50] sm:$0xff]
    %v2363 = vld [vmem:[#allocation5 + $0x58] sm:$0xff]
    %v2364 = vld [vmem:[#allocation5 + $0x60] sm:$0xff]
    %v2365 = vld [vmem:[#allocation5 + $0x68] sm:$0xff]
    %v2366 = vld [vmem:[#allocation5 + $0x70] sm:$0xff]
    %v2367 = vld [vmem:[#allocation5 + $0x78] sm:$0xff]
    %v2368 = vld [vmem:[%s5] sm:$0x1]
    %v2370 = vlaneseq
    %v2371 = vshrl.u32 %v2370, 7
    %v2372 = vsub.s32 0, %v2371
    %v2373 = vrot.slane %v2368, %v2372
    %2375 = vmatprep.subr.mxu0 0.0
    %2376 = vmatpush1.msra.mxu0 %v2352
    %2377 = vmatprep.subr.mxu0 0.0
    %2378 = vmatpush1.msra.mxu0 %v2353
    %2379 = vmatprep.subr.mxu0 0.0
    %2380 = vmatpush1.msra.mxu0 %v2354
    %2381 = vmatprep.subr.mxu0 0.0
    %2382 = vmatpush1.msra.mxu0 %v2355
    %2383 = vmatprep.subr.mxu0 0.0
    %2384 = vmatpush1.msra.mxu0 %v2356
    %2385 = vmatprep.subr.mxu0 0.0
    %2386 = vmatpush1.msra.mxu0 %v2357
    %2387 = vmatprep.subr.mxu0 0.0
    %2388 = vmatpush1.msra.mxu0 %v2358
    %2389 = vmatprep.subr.mxu0 0.0
    %2390 = vmatpush1.msra.mxu0 %v2359
    %2391 = vmatprep.subr.mxu0 0.0
    %2392 = vmatpush1.msra.mxu0 %v2360
    %2393 = vmatprep.subr.mxu0 0.0
    %2394 = vmatpush1.msra.mxu0 %v2361
    %2395 = vmatprep.subr.mxu0 0.0
    %2396 = vmatpush1.msra.mxu0 %v2362
    %2397 = vmatprep.subr.mxu0 0.0
    %2398 = vmatpush1.msra.mxu0 %v2363
    %2399 = vmatprep.subr.mxu0 0.0
    %2400 = vmatpush1.msra.mxu0 %v2364
    %2401 = vmatprep.subr.mxu0 0.0
    %2402 = vmatpush1.msra.mxu0 %v2365
    %2403 = vmatprep.subr.mxu0 0.0
    %2404 = vmatpush1.msra.mxu0 %v2366
    %2405 = vmatprep.subr.mxu0 0.0
    %2406 = vmatpush1.msra.mxu0 %v2367
    %2407 = vmatprep.subr.mxu0 0.0
    %2408 = vmatpush1.msra.mxu0 0.0
    %2409 = vmatprep.subr.mxu0 0.0
    %2410 = vmatpush1.msra.mxu0 0.0
    %2411 = vmatprep.subr.mxu0 0.0
    %2412 = vmatpush1.msra.mxu0 0.0
    %2413 = vmatprep.subr.mxu0 0.0
    %2414 = vmatpush1.msra.mxu0 0.0
    %2415 = vmatprep.subr.mxu0 0.0
    %2416 = vmatpush1.msra.mxu0 0.0
    %2417 = vmatprep.subr.mxu0 0.0
    %2418 = vmatpush1.msra.mxu0 0.0
    %2419 = vmatprep.subr.mxu0 0.0
    %2420 = vmatpush1.msra.mxu0 0.0
    %2421 = vmatprep.subr.mxu0 0.0
    %2422 = vmatpush1.msra.mxu0 0.0
    %2423 = vmatprep.subr.mxu0 0.0
    %2424 = vmatpush1.msra.mxu0 0.0
    %2425 = vmatprep.subr.mxu0 0.0
    %2426 = vmatpush1.msra.mxu0 0.0
    %2427 = vmatprep.subr.mxu0 0.0
    %2428 = vmatpush1.msra.mxu0 0.0
    %2429 = vmatprep.subr.mxu0 0.0
    %2430 = vmatpush1.msra.mxu0 0.0
    %2431 = vmatprep.subr.mxu0 0.0
    %2432 = vmatpush1.msra.mxu0 0.0
    %2433 = vmatprep.subr.mxu0 0.0
    %2434 = vmatpush1.msra.mxu0 0.0
    %2435 = vmatprep.subr.mxu0 0.0
    %2436 = vmatpush1.msra.mxu0 0.0
    %2437 = vmatprep.subr.mxu0 0.0
    %2438 = vmatpush1.msra.mxu0 0.0
    %2439 = vmatprep.mubr.f32.mxu0 0.0
    %2440 = vmatmul.mubr.f32.gmra.mrb[0].mxu0 %v2351
    %v2441 = vpop.f32.mrb[0].mxu0
    %v2442 = vadd.f32 %v2373, %v2441
    %v2443 = vpop.f32.mrb[0].mxu0
    %2444 = vdwg.mxu0
    %2445 = vst [vmem:[%s6] sm:$0xff] %v2442
    // Predicated region
    $region34: #{_lstm_forward.1} parent=1 // pred_check
      _
    $region35: #{_lstm_forward.1} parent=1 // pred_check_branch
      %2447 = sbr.rel (0) target = $region37
    $region36: #{_lstm_forward.1} parent=1 // pred_region
      _
    $region37: #{_lstm_forward.1} parent=1 // pred_fallthru
      _
    // Predicated region
    $region38: #{_lstm_forward.1} parent=1 // pred_check
      _
    $region39: #{_lstm_forward.1} parent=1 // pred_check_branch
      %2449 = sbr.rel (0) target = $region41
    $region40: #{_lstm_forward.1} parent=1 // pred_region
      _
    $region41: #{_lstm_forward.1} parent=1 // pred_fallthru
      _
    %2450 = vsyncpa [#allocation4], 1
    %2451 = vsyncpa [#allocation6], 1

</llo_original>
